<compile_context>
chip_gen: v7x
topology: tpu7x:2x2x1
jax: 0.10.0
libtpu: 0.0.40
codegen_flags: <defaults>
</compile_context>

<pallas_src>
import functools
import math

import jax
import jax.numpy as jnp
from jax.experimental import pallas as pl
from jax.experimental.pallas import tpu as pltpu

_HALF_LOG_2PI = 0.5 * math.log(2.0 * math.pi)


def _round_up(x, m):
    return (x + m - 1) // m * m


def _on_tpu():
    try:
        return jax.devices()[0].platform == "tpu"
    except Exception:
        return False


def _pick_batch_tile(B, block_b, max_tile=4096):
    """Large batch tile (amortize ~0.35us/step overhead) but >=2 grid steps."""
    if block_b is not None:
        TB = _round_up(max(8, min(int(block_b), B)), 8)
    else:
        TB = _round_up(max(8, -(-B // 2)), 8)   # ceil(B/2) -> 2 steps by default
        TB = min(TB, max_tile)
    # Guarantee at least 2 grid steps whenever B allows it (v7x megacore).
    if TB >= B > 8:
        TB = _round_up(-(-B // 2), 8)
    return max(8, TB)


def _actor_kernel(*refs, act_dim, have_action):
    if have_action:
        (obs_ref, act_ref, w1_ref, b1_ref, w2_ref, b2_ref,
         w3_ref, b3_ref, inv_std_ref, c_ref, out_ref) = refs
    else:
        (obs_ref, w1_ref, b1_ref, w2_ref, b2_ref,
         w3_ref, b3_ref, out_ref) = refs

    wdt = w1_ref.dtype  # bf16 matmul operands on TPU, f32 otherwise

    # ---- mu_net: Linear -> Tanh -> Linear -> Tanh -> Linear (identity) ----
    h = jnp.dot(obs_ref[...], w1_ref[...], preferred_element_type=jnp.float32)
    h = jnp.tanh(h + b1_ref[...])
    h = jnp.dot(h.astype(wdt), w2_ref[...], preferred_element_type=jnp.float32)
    h = jnp.tanh(h + b2_ref[...])
    # w3/b3 are zero-padded to the lane-dense output width, so the MXU writes
    # mu into lanes [0, act_dim) and exact zeros into the remaining lanes.
    mu_full = (jnp.dot(h.astype(wdt), w3_ref[...],
                       preferred_element_type=jnp.float32) + b3_ref[...])

    if not have_action:
        out_ref[...] = mu_full          # single unmasked lane-dense store
        return

    # ---- Gaussian log-prob summed over action dim (all f32) ----
    mu = mu_full[:, :act_dim]                      # static lane slice (TB, A)
    z = (act_ref[...] - mu) * inv_std_ref[...]     # inv_std = exp(-log_std)
    lp = -0.5 * z * z + c_ref[...]                 # c = -log_std - 0.5*log(2*pi)
    logp = jnp.sum(lp, axis=-1, keepdims=True)     # (TB, 1)

    # ---- pack [mu | logp | 0 ...] into one lane-dense (TB, 128k) store ----
    # (iota+where kept over a masked single-lane store: VPU has slack and this
    #  lowering is known-good.)
    lane = jax.lax.broadcasted_iota(jnp.int32, mu_full.shape, 1)
    out_ref[...] = jnp.where(lane == act_dim, logp, mu_full)


def mlp_gaussian_actor_forward(obs, action, params, *, block_b=None, use_bf16=None,
                               return_packed=False):
    """Pallas forward.

    Returns ((mu, std), logp_a) with logp_a None if action is None, or
    (packed_slab, std) if return_packed=True, where packed_slab is (B, 128k)
    f32 with mu in lanes [0, A) and the summed log-prob in lane A.
    """
    w1, b1, w2, b2, w3, b3, log_std = params
    B, obs_dim = obs.shape
    A = w3.shape[1]

    if use_bf16 is None:
        # bf16 MXU operands are native on every TPU generation (v5e included).
        use_bf16 = _on_tpu()
    wdt = jnp.bfloat16 if use_bf16 else jnp.float32

    have_action = action is not None

    TB = _pick_batch_tile(B, block_b)
    grid = (pl.cdiv(B, TB),)   # ragged edge block is clipped by Pallas; no wrapper pad

    # --- lane-dense packed output width: mu in [0, A), logp in lane A ---
    pad_w = _round_up(A + 1, 128)

    # Hoisted per-action constants.
    log_std_r = log_std.reshape(1, -1).astype(jnp.float32)
    std = jnp.exp(log_std.astype(jnp.float32))

    # Layer params; final layer zero-padded to the lane-dense width.
    w3p = jnp.pad(w3, ((0, 0), (0, pad_w - A)))
    b3p = jnp.pad(b3.reshape(1, -1), ((0, 0), (0, pad_w - A))).astype(jnp.float32)
    b1r = b1.reshape(1, -1).astype(jnp.float32)
    b2r = b2.reshape(1, -1).astype(jnp.float32)

    obs_in = obs.astype(wdt)
    w1c = w1.astype(wdt)
    w2c = w2.astype(wdt)
    w3c = w3p.astype(wdt)

    const_spec = lambda a: pl.BlockSpec(a.shape, lambda i: (0, 0))
    obs_spec = pl.BlockSpec((TB, obs_dim), lambda i: (i, 0))
    out_spec = pl.BlockSpec((TB, pad_w), lambda i: (i, 0))

    if have_action:
        inv_std = jnp.exp(-log_std_r)                    # (1, A)
        c = -log_std_r - _HALF_LOG_2PI                   # (1, A)
        act_in = action.astype(jnp.float32)
        inputs = (obs_in, act_in, w1c, b1r, w2c, b2r, w3c, b3p, inv_std, c)
        in_specs = [obs_spec,
                    pl.BlockSpec((TB, A), lambda i: (i, 0)),
                    const_spec(w1c), const_spec(b1r),
                    const_spec(w2c), const_spec(b2r),
                    const_spec(w3c), const_spec(b3p),
                    const_spec(inv_std), const_spec(c)]
    else:
        inputs = (obs_in, w1c, b1r, w2c, b2r, w3c, b3p)
        in_specs = [obs_spec,
                    const_spec(w1c), const_spec(b1r),
                    const_spec(w2c), const_spec(b2r),
                    const_spec(w3c), const_spec(b3p)]

    out = pl.pallas_call(
        functools.partial(_actor_kernel, act_dim=A, have_action=have_action),
        out_shape=jax.ShapeDtypeStruct((B, pad_w), jnp.float32),
        grid=grid,
        in_specs=in_specs,
        out_specs=out_spec,
        compiler_params=pltpu.CompilerParams(
            dimension_semantics=("parallel",),
            vmem_limit_bytes=32 * 1024 * 1024,
        ),
    )(*inputs)

    if return_packed:
        # Consumers must read lanes [0, A) as mu and lane A as logp; remaining
        # lanes are exact zeros.
        return out, std

    mu = out[:, :A]
    logp_a = out[:, A] if have_action else None
    pi = (mu, std)                  # Normal(mu, std) represented as a tuple
    return pi, logp_a


def reference_forward(obs, action, params):
    """Pure-JAX reference matching the PyTorch module."""
    w1, b1, w2, b2, w3, b3, log_std = params
    h = jnp.tanh(obs @ w1 + b1)
    h = jnp.tanh(h @ w2 + b2)
    mu = h @ w3 + b3
    std = jnp.exp(log_std)
    z = (action - mu) / std
    logp = jnp.sum(-0.5 * z * z - log_std - _HALF_LOG_2PI, axis=-1)
    return mu, std, logp


def init_params(key, obs_dim, hidden_sizes, action_dim):
    """Deterministic parameter init (nn.Linear-style; weights stored as (in, out))."""
    sizes = [obs_dim] + list(hidden_sizes) + [action_dim]
    params = []
    for j in range(len(sizes) - 1):
        key, kw, kb = jax.random.split(key, 3)
        bound = 1.0 / math.sqrt(sizes[j])
        w = jax.random.uniform(kw, (sizes[j], sizes[j + 1]), jnp.float32, -bound, bound)
        b = jax.random.uniform(kb, (sizes[j + 1],), jnp.float32, -bound, bound)
        params += [w, b]
    log_std = -0.5 * jnp.ones((action_dim,), jnp.float32)
    params.append(log_std)
    return tuple(params)


if __name__ == "__main__":
    obs_dim, action_dim = 16, 4
    hidden_sizes = (32, 32)
    batch = 1000   # not a multiple of the tile -> exercises the clipped edge block

    key = jax.random.PRNGKey(0)
    kp, ko, ka = jax.random.split(key, 3)
    params = init_params(kp, obs_dim, hidden_sizes, action_dim)
    obs = jax.random.normal(ko, (batch, obs_dim), jnp.float32)
    action = jax.random.normal(ka, (batch, action_dim), jnp.float32)

    mu_ref, std_ref, logp_ref = reference_forward(obs, action, params)

    # f32-operand path: tight check against the pure-JAX reference.
    (mu32, std32), logp32 = mlp_gaussian_actor_forward(obs, action, params, use_bf16=False)
    jax.block_until_ready((mu32, std32, logp32))
    assert jnp.allclose(mu32, mu_ref, atol=1e-3, rtol=1e-3)
    assert jnp.allclose(logp32, logp_ref, atol=1e-3, rtol=1e-3)
    assert jnp.allclose(std32, std_ref)

    # Default path (bf16 MXU operands on TPU): explicit-tolerance numeric check.
    (mu, std), logp_a = mlp_gaussian_actor_forward(obs, action, params)
    jax.block_until_ready((mu, std, logp_a))
    assert mu.shape == (batch, action_dim)
    assert std.shape == (action_dim,)
    assert logp_a.shape == (batch,)
    assert float(jnp.max(jnp.abs(mu - mu_ref))) < 5e-2
    assert float(jnp.max(jnp.abs(logp_a - logp_ref))) < 5e-1

    # action=None inference path: mu-only kernel variant, no (B, A) zeros round-trip.
    (mu_pi, std_pi), logp_none = mlp_gaussian_actor_forward(obs, None, params)
    jax.block_until_ready((mu_pi, std_pi))
    assert logp_none is None
    assert mu_pi.shape == (batch, action_dim)
    assert float(jnp.max(jnp.abs(mu_pi - mu_ref))) < 5e-2

    # Packed-slab path (skips the post-kernel lane-slice pass; downstream fuses it).
    packed, std_p = mlp_gaussian_actor_forward(obs, action, params, return_packed=True)
    jax.block_until_ready((packed, std_p))
    assert packed.shape[0] == batch and packed.shape[1] % 128 == 0
    assert float(jnp.max(jnp.abs(packed[:, action_dim] - logp_ref))) < 5e-1

    print("KERNEL_OK")
</pallas_src>

<mosaic_0001>
module attributes {stable_mosaic.version = 11 : i64} {
  func.func @_actor_kernel(%arg0: i32, %arg1: memref<504x16xf32, #tpu.memory_space<vmem>>, %arg2: memref<504x4xf32, #tpu.memory_space<vmem>>, %arg3: memref<16x32xf32, #tpu.memory_space<vmem>>, %arg4: memref<1x32xf32, #tpu.memory_space<vmem>>, %arg5: memref<32x32xf32, #tpu.memory_space<vmem>>, %arg6: memref<1x32xf32, #tpu.memory_space<vmem>>, %arg7: memref<32x128xf32, #tpu.memory_space<vmem>>, %arg8: memref<1x128xf32, #tpu.memory_space<vmem>>, %arg9: memref<1x4xf32, #tpu.memory_space<vmem>>, %arg10: memref<1x4xf32, #tpu.memory_space<vmem>>, %arg11: memref<504x128xf32, #tpu.memory_space<vmem>>) attributes {dimension_semantics = [#tpu.dimension_semantics<parallel>], iteration_bounds = array<i64: 2>, scalar_prefetch = 0 : i64, scratch_operands = 0 : i64, tpu.core_type = #tpu.core_type<tc>, window_params = [{transform_indices = @transform_0, window_bounds = array<i64: 504, 16>}, {transform_indices = @transform_1, window_bounds = array<i64: 504, 4>}, {pipeline_mode = #tpu.pipeline_mode<synchronous>, transform_indices = @transform_2, window_bounds = array<i64: 16, 32>}, {pipeline_mode = #tpu.pipeline_mode<synchronous>, transform_indices = @transform_3, window_bounds = array<i64: 1, 32>}, {pipeline_mode = #tpu.pipeline_mode<synchronous>, transform_indices = @transform_4, window_bounds = array<i64: 32, 32>}, {pipeline_mode = #tpu.pipeline_mode<synchronous>, transform_indices = @transform_5, window_bounds = array<i64: 1, 32>}, {pipeline_mode = #tpu.pipeline_mode<synchronous>, transform_indices = @transform_6, window_bounds = array<i64: 32, 128>}, {pipeline_mode = #tpu.pipeline_mode<synchronous>, transform_indices = @transform_7, window_bounds = array<i64: 1, 128>}, {pipeline_mode = #tpu.pipeline_mode<synchronous>, transform_indices = @transform_8, window_bounds = array<i64: 1, 4>}, {pipeline_mode = #tpu.pipeline_mode<synchronous>, transform_indices = @transform_9, window_bounds = array<i64: 1, 4>}, {transform_indices = @transform_10, window_bounds = array<i64: 504, 128>}]} {
    %c0 = arith.constant 0 : index
    %c0_0 = arith.constant 0 : index
    %0 = vector.load %arg1[%c0, %c0_0] : memref<504x16xf32, #tpu.memory_space<vmem>>, vector<504x16xf32>
    %c0_1 = arith.constant 0 : index
    %c0_2 = arith.constant 0 : index
    %1 = vector.load %arg3[%c0_1, %c0_2] : memref<16x32xf32, #tpu.memory_space<vmem>>, vector<16x32xf32>
    %cst = arith.constant dense<0.000000e+00> : vector<504x32xf32>
    %2 = tpu.matmul %0, %1, %cst {dimension_numbers = #tpu.dot_dimension_numbers<[1], [0], [0], [1], [0, 0, 1, 1], [], []>} : vector<504x16xf32>, vector<16x32xf32>, vector<504x32xf32> -> vector<504x32xf32>
    %c0_3 = arith.constant 0 : index
    %c0_4 = arith.constant 0 : index
    %3 = vector.load %arg4[%c0_3, %c0_4] : memref<1x32xf32, #tpu.memory_space<vmem>>, vector<1x32xf32>
    %4 = vector.broadcast %3 : vector<1x32xf32> to vector<504x32xf32>
    %5 = arith.addf %2, %4 : vector<504x32xf32>
    %6 = math.tanh %5 : vector<504x32xf32>
    %c0_5 = arith.constant 0 : index
    %c0_6 = arith.constant 0 : index
    %7 = vector.load %arg5[%c0_5, %c0_6] : memref<32x32xf32, #tpu.memory_space<vmem>>, vector<32x32xf32>
    %cst_7 = arith.constant dense<0.000000e+00> : vector<504x32xf32>
    %8 = tpu.matmul %6, %7, %cst_7 {dimension_numbers = #tpu.dot_dimension_numbers<[1], [0], [0], [1], [0, 0, 1, 1], [], []>} : vector<504x32xf32>, vector<32x32xf32>, vector<504x32xf32> -> vector<504x32xf32>
    %c0_8 = arith.constant 0 : index
    %c0_9 = arith.constant 0 : index
    %9 = vector.load %arg6[%c0_8, %c0_9] : memref<1x32xf32, #tpu.memory_space<vmem>>, vector<1x32xf32>
    %10 = vector.broadcast %9 : vector<1x32xf32> to vector<504x32xf32>
    %11 = arith.addf %8, %10 : vector<504x32xf32>
    %12 = math.tanh %11 : vector<504x32xf32>
    %c0_10 = arith.constant 0 : index
    %c0_11 = arith.constant 0 : index
    %13 = vector.load %arg7[%c0_10, %c0_11] : memref<32x128xf32, #tpu.memory_space<vmem>>, vector<32x128xf32>
    %cst_12 = arith.constant dense<0.000000e+00> : vector<504x128xf32>
    %14 = tpu.matmul %12, %13, %cst_12 {dimension_numbers = #tpu.dot_dimension_numbers<[1], [0], [0], [1], [0, 0, 1, 1], [], []>} : vector<504x32xf32>, vector<32x128xf32>, vector<504x128xf32> -> vector<504x128xf32>
    %c0_13 = arith.constant 0 : index
    %c0_14 = arith.constant 0 : index
    %15 = vector.load %arg8[%c0_13, %c0_14] : memref<1x128xf32, #tpu.memory_space<vmem>>, vector<1x128xf32>
    %16 = vector.broadcast %15 : vector<1x128xf32> to vector<504x128xf32>
    %17 = arith.addf %14, %16 : vector<504x128xf32>
    %18 = vector.extract_strided_slice %17 {offsets = [0, 0], sizes = [504, 4], strides = [1, 1]} : vector<504x128xf32> to vector<504x4xf32>
    %c0_15 = arith.constant 0 : index
    %c0_16 = arith.constant 0 : index
    %19 = vector.load %arg2[%c0_15, %c0_16] : memref<504x4xf32, #tpu.memory_space<vmem>>, vector<504x4xf32>
    %20 = arith.subf %19, %18 : vector<504x4xf32>
    %c0_17 = arith.constant 0 : index
    %c0_18 = arith.constant 0 : index
    %21 = vector.load %arg9[%c0_17, %c0_18] : memref<1x4xf32, #tpu.memory_space<vmem>>, vector<1x4xf32>
    %22 = vector.broadcast %21 : vector<1x4xf32> to vector<504x4xf32>
    %23 = arith.mulf %20, %22 : vector<504x4xf32>
    %cst_19 = arith.constant -5.000000e-01 : f32
    %24 = vector.broadcast %cst_19 : f32 to vector<504x4xf32>
    %25 = arith.mulf %24, %23 : vector<504x4xf32>
    %26 = arith.mulf %25, %23 : vector<504x4xf32>
    %c0_20 = arith.constant 0 : index
    %c0_21 = arith.constant 0 : index
    %27 = vector.load %arg10[%c0_20, %c0_21] : memref<1x4xf32, #tpu.memory_space<vmem>>, vector<1x4xf32>
    %28 = vector.broadcast %27 : vector<1x4xf32> to vector<504x4xf32>
    %29 = arith.addf %26, %28 : vector<504x4xf32>
    %cst_22 = arith.constant dense<0.000000e+00> : vector<504xf32>
    %30 = vector.multi_reduction <add>, %29, %cst_22 [1] : vector<504x4xf32> to vector<504xf32>
    %31 = vector.shape_cast %30 : vector<504xf32> to vector<504x1xf32>
    %32 = tpu.iota {dimensions = array<i32: 1>} : vector<504x128xi32>
    %c4_i32 = arith.constant 4 : i32
    %33 = vector.broadcast %c4_i32 : i32 to vector<504x128xi32>
    %34 = arith.cmpi eq, %32, %33 : vector<504x128xi32>
    %35 = vector.shape_cast %31 : vector<504x1xf32> to vector<504x1xf32>
    %36 = vector.broadcast %35 : vector<504x1xf32> to vector<504x128xf32>
    %37 = arith.select %34, %36, %17 : vector<504x128xi1>, vector<504x128xf32>
    %c0_23 = arith.constant 0 : index
    %c0_24 = arith.constant 0 : index
    %38 = vector.load %arg11[%c0_23, %c0_24] : memref<504x128xf32, #tpu.memory_space<vmem>>, vector<504x128xf32>
    tpu.vector_store %arg11[%c0_23, %c0_24], %37 {strides = array<i32>} : memref<504x128xf32, #tpu.memory_space<vmem>>, vector<504x128xf32>,
    return
  }
  func.func @transform_0(%arg0: i32) -> (i32, i32) {
    %c0_i32 = arith.constant 0 : i32
    %c0_i32_0 = arith.constant 0 : i32
    return %arg0, %c0_i32 : i32, i32
  }
  func.func @transform_1(%arg0: i32) -> (i32, i32) {
    %c0_i32 = arith.constant 0 : i32
    %c0_i32_0 = arith.constant 0 : i32
    return %arg0, %c0_i32 : i32, i32
  }
  func.func @transform_2(%arg0: i32) -> (i32, i32) {
    %c0_i32 = arith.constant 0 : i32
    %c0_i32_0 = arith.constant 0 : i32
    %c0_i32_1 = arith.constant 0 : i32
    return %c0_i32, %c0_i32_0 : i32, i32
  }
  func.func @transform_3(%arg0: i32) -> (i32, i32) {
    %c0_i32 = arith.constant 0 : i32
    %c0_i32_0 = arith.constant 0 : i32
    %c0_i32_1 = arith.constant 0 : i32
    return %c0_i32, %c0_i32_0 : i32, i32
  }
  func.func @transform_4(%arg0: i32) -> (i32, i32) {
    %c0_i32 = arith.constant 0 : i32
    %c0_i32_0 = arith.constant 0 : i32
    %c0_i32_1 = arith.constant 0 : i32
    return %c0_i32, %c0_i32_0 : i32, i32
  }
  func.func @transform_5(%arg0: i32) -> (i32, i32) {
    %c0_i32 = arith.constant 0 : i32
    %c0_i32_0 = arith.constant 0 : i32
    %c0_i32_1 = arith.constant 0 : i32
    return %c0_i32, %c0_i32_0 : i32, i32
  }
  func.func @transform_6(%arg0: i32) -> (i32, i32) {
    %c0_i32 = arith.constant 0 : i32
    %c0_i32_0 = arith.constant 0 : i32
    %c0_i32_1 = arith.constant 0 : i32
    return %c0_i32, %c0_i32_0 : i32, i32
  }
  func.func @transform_7(%arg0: i32) -> (i32, i32) {
    %c0_i32 = arith.constant 0 : i32
    %c0_i32_0 = arith.constant 0 : i32
    %c0_i32_1 = arith.constant 0 : i32
    return %c0_i32, %c0_i32_0 : i32, i32
  }
  func.func @transform_8(%arg0: i32) -> (i32, i32) {
    %c0_i32 = arith.constant 0 : i32
    %c0_i32_0 = arith.constant 0 : i32
    %c0_i32_1 = arith.constant 0 : i32
    return %c0_i32, %c0_i32_0 : i32, i32
  }
  func.func @transform_9(%arg0: i32) -> (i32, i32) {
    %c0_i32 = arith.constant 0 : i32
    %c0_i32_0 = arith.constant 0 : i32
    %c0_i32_1 = arith.constant 0 : i32
    return %c0_i32, %c0_i32_0 : i32, i32
  }
  func.func @transform_10(%arg0: i32) -> (i32, i32) {
    %c0_i32 = arith.constant 0 : i32
    %c0_i32_0 = arith.constant 0 : i32
    return %arg0, %c0_i32 : i32, i32
  }
}

</mosaic_0001>

<llo_original>
// kernel: tpu_custom_call.1
$region0: #{tpu_custom_call.1}
  #allocation0 [shape = 'u32[]', space=smem, size = 0x4, offset = 0x4, fixed_abs, tag = 'smem constant byte address 0x4 - core index']
  #allocation1 [shape = 'u32[144,128]{1,0:T(1,128)}', space=vmem, size = 0x12000, scoped, tag = 'internal scratch']
  %s0 = inlined_call_operand.vmem [shape: f32[1000,16], index: 0, kind: input, shape index: {}]
  %s1 = inlined_call_operand.vmem [shape: f32[1000,4], index: 1, kind: input, shape index: {}]
  %s2 = inlined_call_operand.vmem [shape: f32[16,32], index: 2, kind: input, shape index: {}]
  %s3 = inlined_call_operand.vmem [shape: f32[1,32], index: 3, kind: input, shape index: {}]
  %s4 = inlined_call_operand.vmem [shape: f32[32,32], index: 4, kind: input, shape index: {}]
  %s5 = inlined_call_operand.vmem [shape: f32[1,32], index: 5, kind: input, shape index: {}]
  %s6 = inlined_call_operand.vmem [shape: f32[32,128], index: 6, kind: input, shape index: {}]
  %s7 = inlined_call_operand.vmem [shape: f32[1,128], index: 7, kind: input, shape index: {}]
  %s8 = inlined_call_operand.vmem [shape: f32[1,4], index: 8, kind: input, shape index: {}]
  %s9 = inlined_call_operand.vmem [shape: f32[1,4], index: 9, kind: input, shape index: {}]
  %s10 = inlined_call_operand.hbm [shape: f32[1000,128], index: 10, kind: output, shape index: {}]
  %s11 = sld [smem:[#allocation0]]
  $region73: #{tpu_custom_call.1} parent=0
    _
  %s13 = ssub.s32 1, %s11
  %s14 = scalar_select 0, %s13, %s11
  $region1: #{tpu_custom_call.1} parent=0
    #allocation2 [shape = 'u8[516096]{0}', space=vmem, size = 0x7e000, scoped, tag = 'output window, operand 0']
    #allocation3 [shape = 's32[2]{0}', space=sflag, size = 0x8, scoped, tag = 'scoped memory for tpu_custom_call.1']
    %15 = vsyncpa [#allocation3], 0
    %s16 = scalar_lea.sflag [#allocation3], 1
    %17 = vsyncpa %s16, 0
    loop: start=0, step=1, limit=4
    $region2: #{tpu_custom_call.1} parent=1 // loop_pre_header
      _
    $region3: #{tpu_custom_call.1} parent=1 // loop_header
      %s19 = sphi 0, %s23
      %p20 = scmp.ge.s32.totalorder %s19, 4
      %s29 = sphi 0, %s31
      %s32 = sphi 0, %s29
      %s33 = sphi 0, %s32
      %s49 = sphi 0, %s33
      %s55 = sphi 0, %s57
      %s58 = sphi 0, %s55
      %s59 = sphi 0, %s58
      %s75 = sphi 0, %s59
      %s79 = sphi 0, %s79
      %s81 = sphi 0, %s79
      %s82 = sphi 0, %s81
      %s96 = sphi 0, %s82
      %s100 = sphi 0, %s100
      %s102 = sphi 0, %s100
      %s103 = sphi 0, %s102
      %s117 = sphi 0, %s103
      %s121 = sphi 0, %s121
      %s123 = sphi 0, %s121
      %s124 = sphi 0, %s123
      %s138 = sphi 0, %s124
      %s142 = sphi 0, %s142
      %s144 = sphi 0, %s142
      %s145 = sphi 0, %s144
      %s159 = sphi 0, %s145
      %s163 = sphi 0, %s163
      %s165 = sphi 0, %s163
      %s166 = sphi 0, %s165
      %s180 = sphi 0, %s166
      %s184 = sphi 0, %s184
      %s186 = sphi 0, %s184
      %s187 = sphi 0, %s186
      %s201 = sphi 0, %s187
      %s205 = sphi 0, %s205
      %s207 = sphi 0, %s205
      %s208 = sphi 0, %s207
      %s222 = sphi 0, %s208
      %s226 = sphi 0, %s226
      %s228 = sphi 0, %s226
      %s229 = sphi 0, %s228
      %s243 = sphi 0, %s229
      %s249 = sphi 0, %s251
      %s252 = sphi 0, %s249
      %s253 = sphi 0, %s252
      %s269 = sphi 0, %s253
    $region4: #{tpu_custom_call.1} parent=1 // loop_header_branch
      %22 = sbr.rel (%p20) target = $region8
    $region5: #{tpu_custom_call.1} parent=1 // loop_body
      %s24 = ssub.s32 %s19, 1
      %s25 = ssub.s32 %s19, 2
      %s26 = sadd.s32 %s19, 1
      %s27 = ssub.s32 %s19, %s26
      %p28 = scmp.eq.s32.totalorder %s27, 0
      %s30 = sadd.s32 %s29, 1
      %s31 = scalar_select %p28, %s29, %s30
      %p34 = pneg %p28
      %p35 = scmp.eq.s32.totalorder %s19, 1
      %p36 = por %p34, %p35
      %p37 = scmp.ne.s32.totalorder %s29, %s32
      %p38 = scmp.eq.s32.totalorder %s19, 0
      %p39 = por %p37, %p38
      %p40 = scmp.ne.s32.totalorder %s29, %s32
      %p41 = scmp.eq.s32.totalorder %s24, 1
      %p42 = por %p40, %p41
      %p43 = scmp.ne.s32.totalorder %s32, %s33
      %p44 = scmp.eq.s32.totalorder %s24, 0
      %p45 = por %p43, %p44
      %p46 = scmp.ne.s32.totalorder %s32, %s33
      %p47 = scmp.eq.s32.totalorder %s25, 1
      %p48 = por %p46, %p47
      %p50 = scmp.ne.s32.totalorder %s33, %s49
      %p51 = scmp.eq.s32.totalorder %s25, 0
      %p52 = por %p50, %p51
      %s53 = ssub.s32 %s19, %s26
      %p54 = scmp.eq.s32.totalorder %s53, 0
      %s56 = sadd.s32 %s55, 1
      %s57 = scalar_select %p54, %s55, %s56
      %p60 = pneg %p54
      %p61 = scmp.eq.s32.totalorder %s19, 1
      %p62 = por %p60, %p61
      %p63 = scmp.ne.s32.totalorder %s55, %s58
      %p64 = scmp.eq.s32.totalorder %s19, 0
      %p65 = por %p63, %p64
      %p66 = scmp.ne.s32.totalorder %s55, %s58
      %p67 = scmp.eq.s32.totalorder %s24, 1
      %p68 = por %p66, %p67
      %p69 = scmp.ne.s32.totalorder %s58, %s59
      %p70 = scmp.eq.s32.totalorder %s24, 0
      %p71 = por %p69, %p70
      %p72 = scmp.ne.s32.totalorder %s58, %s59
      %p73 = scmp.eq.s32.totalorder %s25, 1
      %p74 = por %p72, %p73
      %p76 = scmp.ne.s32.totalorder %s59, %s75
      %p77 = scmp.eq.s32.totalorder %s25, 0
      %p78 = por %p76, %p77
      %s80 = sadd.s32 %s79, 1
      %p83 = scmp.eq.s32.totalorder %s19, 1
      %p84 = scmp.ne.s32.totalorder %s79, %s81
      %p85 = scmp.eq.s32.totalorder %s19, 0
      %p86 = por %p84, %p85
      %p87 = scmp.ne.s32.totalorder %s79, %s81
      %p88 = scmp.eq.s32.totalorder %s24, 1
      %p89 = por %p87, %p88
      %p90 = scmp.ne.s32.totalorder %s81, %s82
      %p91 = scmp.eq.s32.totalorder %s24, 0
      %p92 = por %p90, %p91
      %p93 = scmp.ne.s32.totalorder %s81, %s82
      %p94 = scmp.eq.s32.totalorder %s25, 1
      %p95 = por %p93, %p94
      %p97 = scmp.ne.s32.totalorder %s82, %s96
      %p98 = scmp.eq.s32.totalorder %s25, 0
      %p99 = por %p97, %p98
      %s101 = sadd.s32 %s100, 1
      %p104 = scmp.eq.s32.totalorder %s19, 1
      %p105 = scmp.ne.s32.totalorder %s100, %s102
      %p106 = scmp.eq.s32.totalorder %s19, 0
      %p107 = por %p105, %p106
      %p108 = scmp.ne.s32.totalorder %s100, %s102
      %p109 = scmp.eq.s32.totalorder %s24, 1
      %p110 = por %p108, %p109
      %p111 = scmp.ne.s32.totalorder %s102, %s103
      %p112 = scmp.eq.s32.totalorder %s24, 0
      %p113 = por %p111, %p112
      %p114 = scmp.ne.s32.totalorder %s102, %s103
      %p115 = scmp.eq.s32.totalorder %s25, 1
      %p116 = por %p114, %p115
      %p118 = scmp.ne.s32.totalorder %s103, %s117
      %p119 = scmp.eq.s32.totalorder %s25, 0
      %p120 = por %p118, %p119
      %s122 = sadd.s32 %s121, 1
      %p125 = scmp.eq.s32.totalorder %s19, 1
      %p126 = scmp.ne.s32.totalorder %s121, %s123
      %p127 = scmp.eq.s32.totalorder %s19, 0
      %p128 = por %p126, %p127
      %p129 = scmp.ne.s32.totalorder %s121, %s123
      %p130 = scmp.eq.s32.totalorder %s24, 1
      %p131 = por %p129, %p130
      %p132 = scmp.ne.s32.totalorder %s123, %s124
      %p133 = scmp.eq.s32.totalorder %s24, 0
      %p134 = por %p132, %p133
      %p135 = scmp.ne.s32.totalorder %s123, %s124
      %p136 = scmp.eq.s32.totalorder %s25, 1
      %p137 = por %p135, %p136
      %p139 = scmp.ne.s32.totalorder %s124, %s138
      %p140 = scmp.eq.s32.totalorder %s25, 0
      %p141 = por %p139, %p140
      %s143 = sadd.s32 %s142, 1
      %p146 = scmp.eq.s32.totalorder %s19, 1
      %p147 = scmp.ne.s32.totalorder %s142, %s144
      %p148 = scmp.eq.s32.totalorder %s19, 0
      %p149 = por %p147, %p148
      %p150 = scmp.ne.s32.totalorder %s142, %s144
      %p151 = scmp.eq.s32.totalorder %s24, 1
      %p152 = por %p150, %p151
      %p153 = scmp.ne.s32.totalorder %s144, %s145
      %p154 = scmp.eq.s32.totalorder %s24, 0
      %p155 = por %p153, %p154
      %p156 = scmp.ne.s32.totalorder %s144, %s145
      %p157 = scmp.eq.s32.totalorder %s25, 1
      %p158 = por %p156, %p157
      %p160 = scmp.ne.s32.totalorder %s145, %s159
      %p161 = scmp.eq.s32.totalorder %s25, 0
      %p162 = por %p160, %p161
      %s164 = sadd.s32 %s163, 1
      %p167 = scmp.eq.s32.totalorder %s19, 1
      %p168 = scmp.ne.s32.totalorder %s163, %s165
      %p169 = scmp.eq.s32.totalorder %s19, 0
      %p170 = por %p168, %p169
      %p171 = scmp.ne.s32.totalorder %s163, %s165
      %p172 = scmp.eq.s32.totalorder %s24, 1
      %p173 = por %p171, %p172
      %p174 = scmp.ne.s32.totalorder %s165, %s166
      %p175 = scmp.eq.s32.totalorder %s24, 0
      %p176 = por %p174, %p175
      %p177 = scmp.ne.s32.totalorder %s165, %s166
      %p178 = scmp.eq.s32.totalorder %s25, 1
      %p179 = por %p177, %p178
      %p181 = scmp.ne.s32.totalorder %s166, %s180
      %p182 = scmp.eq.s32.totalorder %s25, 0
      %p183 = por %p181, %p182
      %s185 = sadd.s32 %s184, 1
      %p188 = scmp.eq.s32.totalorder %s19, 1
      %p189 = scmp.ne.s32.totalorder %s184, %s186
      %p190 = scmp.eq.s32.totalorder %s19, 0
      %p191 = por %p189, %p190
      %p192 = scmp.ne.s32.totalorder %s184, %s186
      %p193 = scmp.eq.s32.totalorder %s24, 1
      %p194 = por %p192, %p193
      %p195 = scmp.ne.s32.totalorder %s186, %s187
      %p196 = scmp.eq.s32.totalorder %s24, 0
      %p197 = por %p195, %p196
      %p198 = scmp.ne.s32.totalorder %s186, %s187
      %p199 = scmp.eq.s32.totalorder %s25, 1
      %p200 = por %p198, %p199
      %p202 = scmp.ne.s32.totalorder %s187, %s201
      %p203 = scmp.eq.s32.totalorder %s25, 0
      %p204 = por %p202, %p203
      %s206 = sadd.s32 %s205, 1
      %p209 = scmp.eq.s32.totalorder %s19, 1
      %p210 = scmp.ne.s32.totalorder %s205, %s207
      %p211 = scmp.eq.s32.totalorder %s19, 0
      %p212 = por %p210, %p211
      %p213 = scmp.ne.s32.totalorder %s205, %s207
      %p214 = scmp.eq.s32.totalorder %s24, 1
      %p215 = por %p213, %p214
      %p216 = scmp.ne.s32.totalorder %s207, %s208
      %p217 = scmp.eq.s32.totalorder %s24, 0
      %p218 = por %p216, %p217
      %p219 = scmp.ne.s32.totalorder %s207, %s208
      %p220 = scmp.eq.s32.totalorder %s25, 1
      %p221 = por %p219, %p220
      %p223 = scmp.ne.s32.totalorder %s208, %s222
      %p224 = scmp.eq.s32.totalorder %s25, 0
      %p225 = por %p223, %p224
      %s227 = sadd.s32 %s226, 1
      %p230 = scmp.eq.s32.totalorder %s19, 1
      %p231 = scmp.ne.s32.totalorder %s226, %s228
      %p232 = scmp.eq.s32.totalorder %s19, 0
      %p233 = por %p231, %p232
      %p234 = scmp.ne.s32.totalorder %s226, %s228
      %p235 = scmp.eq.s32.totalorder %s24, 1
      %p236 = por %p234, %p235
      %p237 = scmp.ne.s32.totalorder %s228, %s229
      %p238 = scmp.eq.s32.totalorder %s24, 0
      %p239 = por %p237, %p238
      %p240 = scmp.ne.s32.totalorder %s228, %s229
      %p241 = scmp.eq.s32.totalorder %s25, 1
      %p242 = por %p240, %p241
      %p244 = scmp.ne.s32.totalorder %s229, %s243
      %p245 = scmp.eq.s32.totalorder %s25, 0
      %p246 = por %p244, %p245
      %s247 = ssub.s32 %s19, %s26
      %p248 = scmp.eq.s32.totalorder %s247, 0
      %s250 = sadd.s32 %s249, 1
      %s251 = scalar_select %p248, %s249, %s250
      %p254 = pneg %p248
      %p255 = scmp.eq.s32.totalorder %s19, 1
      %p256 = por %p254, %p255
      %p257 = scmp.ne.s32.totalorder %s249, %s252
      %p258 = scmp.eq.s32.totalorder %s19, 0
      %p259 = por %p257, %p258
      %p260 = scmp.ne.s32.totalorder %s249, %s252
      %p261 = scmp.eq.s32.totalorder %s24, 1
      %p262 = por %p260, %p261
      %p263 = scmp.ne.s32.totalorder %s252, %s253
      %p264 = scmp.eq.s32.totalorder %s24, 0
      %p265 = por %p263, %p264
      %p266 = scmp.ne.s32.totalorder %s252, %s253
      %p267 = scmp.eq.s32.totalorder %s25, 1
      %p268 = por %p266, %p267
      %p270 = scmp.ne.s32.totalorder %s253, %s269
      %p271 = scmp.eq.s32.totalorder %s25, 0
      %p272 = por %p270, %p271
      %p273 = scmp.le.s32.totalorder 1, %s19
      %p274 = scmp.lt.s32.totalorder %s19, 3
      %p275 = pnand %p273, %p274
      %p276 = pneg %p275
      // Predicated region
      $region9: #{tpu_custom_call.1} parent=5 // pred_check
        _
      $region10: #{tpu_custom_call.1} parent=5 // pred_check_branch
        %278 = sbr.rel (%p275) target = $region12
      $region11: #{tpu_custom_call.1} parent=5 // pred_region
        %s279 = ssub.s32 %s19, 1
        // Predicated region
        $region13: #{tpu_custom_call.1} parent=11 // pred_check
          %p280 = pneg %p92
        $region14: #{tpu_custom_call.1} parent=11 // pred_check_branch
          %282 = sbr.rel (%p280) target = $region16
        $region15: #{tpu_custom_call.1} parent=11 // pred_region
          _
        $region16: #{tpu_custom_call.1} parent=11 // pred_fallthru
          _
        // Predicated region
        $region17: #{tpu_custom_call.1} parent=11 // pred_check
          %p283 = pneg %p113
        $region18: #{tpu_custom_call.1} parent=11 // pred_check_branch
          %285 = sbr.rel (%p283) target = $region20
        $region19: #{tpu_custom_call.1} parent=11 // pred_region
          _
        $region20: #{tpu_custom_call.1} parent=11 // pred_fallthru
          _
        // Predicated region
        $region21: #{tpu_custom_call.1} parent=11 // pred_check
          %p286 = pneg %p134
        $region22: #{tpu_custom_call.1} parent=11 // pred_check_branch
          %288 = sbr.rel (%p286) target = $region24
        $region23: #{tpu_custom_call.1} parent=11 // pred_region
          _
        $region24: #{tpu_custom_call.1} parent=11 // pred_fallthru
          _
        // Predicated region
        $region25: #{tpu_custom_call.1} parent=11 // pred_check
          %p289 = pneg %p155
        $region26: #{tpu_custom_call.1} parent=11 // pred_check_branch
          %291 = sbr.rel (%p289) target = $region28
        $region27: #{tpu_custom_call.1} parent=11 // pred_region
          _
        $region28: #{tpu_custom_call.1} parent=11 // pred_fallthru
          _
        // Predicated region
        $region29: #{tpu_custom_call.1} parent=11 // pred_check
          %p292 = pneg %p176
        $region30: #{tpu_custom_call.1} parent=11 // pred_check_branch
          %294 = sbr.rel (%p292) target = $region32
        $region31: #{tpu_custom_call.1} parent=11 // pred_region
          _
        $region32: #{tpu_custom_call.1} parent=11 // pred_fallthru
          _
        // Predicated region
        $region33: #{tpu_custom_call.1} parent=11 // pred_check
          %p295 = pneg %p197
        $region34: #{tpu_custom_call.1} parent=11 // pred_check_branch
          %297 = sbr.rel (%p295) target = $region36
        $region35: #{tpu_custom_call.1} parent=11 // pred_region
          _
        $region36: #{tpu_custom_call.1} parent=11 // pred_fallthru
          _
        // Predicated region
        $region37: #{tpu_custom_call.1} parent=11 // pred_check
          %p298 = pneg %p218
        $region38: #{tpu_custom_call.1} parent=11 // pred_check_branch
          %300 = sbr.rel (%p298) target = $region40
        $region39: #{tpu_custom_call.1} parent=11 // pred_region
          _
        $region40: #{tpu_custom_call.1} parent=11 // pred_fallthru
          _
        // Predicated region
        $region41: #{tpu_custom_call.1} parent=11 // pred_check
          %p301 = pneg %p239
        $region42: #{tpu_custom_call.1} parent=11 // pred_check_branch
          %303 = sbr.rel (%p301) target = $region44
        $region43: #{tpu_custom_call.1} parent=11 // pred_region
          _
        $region44: #{tpu_custom_call.1} parent=11 // pred_fallthru
          _
      $region12: #{tpu_custom_call.1} parent=5 // pred_fallthru
        _
      %p304 = scmp.lt.s32.totalorder %s19, 2
      // Predicated region
      $region45: #{tpu_custom_call.1} parent=5 // pred_check
        %p305 = pneg %p304
      $region46: #{tpu_custom_call.1} parent=5 // pred_check_branch
        %307 = sbr.rel (%p305) target = $region48
      $region47: #{tpu_custom_call.1} parent=5 // pred_region
        // Predicated region
        $region49: #{tpu_custom_call.1} parent=47 // pred_check
          %p308 = pneg %p39
        $region50: #{tpu_custom_call.1} parent=47 // pred_check_branch
          %310 = sbr.rel (%p308) target = $region52
        $region51: #{tpu_custom_call.1} parent=47 // pred_region
          %s311 = smul.u32 63, %s19
          %s312 = ssub.s32 125, %s311
          %p313 = scmp.lt.s32.totalorder %s312, 63
          %s314 = scalar_select %p313, %s312, 63
          %s315 = smul.u32 128, %s314
          %p316 = scmp.lt.s32.totalorder %s311, 124
          %s317 = scalar_select %p316, %s311, 124
          %s318 = smul.addr %s317, 8
          %s319 = scalar_lea.vmem %s0, %s318
          %s320 = smul.u32 63, %s19
          %s321 = ssub.s32 125, %s320
          %p322 = scmp.lt.s32.totalorder %s321, 63
          %s323 = scalar_select %p322, %s321, 63
          %s324 = smul.u32 128, %s323
        $region52: #{tpu_custom_call.1} parent=47 // pred_fallthru
          _
        // Predicated region
        $region53: #{tpu_custom_call.1} parent=47 // pred_check
          %p325 = pneg %p65
        $region54: #{tpu_custom_call.1} parent=47 // pred_check_branch
          %327 = sbr.rel (%p325) target = $region56
        $region55: #{tpu_custom_call.1} parent=47 // pred_region
          %s328 = smul.u32 63, %s19
          %s329 = ssub.s32 125, %s328
          %p330 = scmp.lt.s32.totalorder %s329, 63
          %s331 = scalar_select %p330, %s329, 63
          %s332 = smul.u32 128, %s331
          %p333 = scmp.lt.s32.totalorder %s328, 124
          %s334 = scalar_select %p333, %s328, 124
          %s335 = smul.addr %s334, 8
          %s336 = scalar_lea.vmem %s1, %s335
          %s337 = smul.u32 63, %s19
          %s338 = ssub.s32 125, %s337
          %p339 = scmp.lt.s32.totalorder %s338, 63
          %s340 = scalar_select %p339, %s338, 63
          %s341 = smul.u32 128, %s340
        $region56: #{tpu_custom_call.1} parent=47 // pred_fallthru
          _
      $region48: #{tpu_custom_call.1} parent=5 // pred_fallthru
        _
      %p342 = scmp.le.s32.totalorder 1, %s19
      %p343 = scmp.lt.s32.totalorder %s19, 3
      %p344 = pnand %p342, %p343
      %p345 = pneg %p344
      // Predicated region
      $region57: #{tpu_custom_call.1} parent=5 // pred_check
        _
      $region58: #{tpu_custom_call.1} parent=5 // pred_check_branch
        %347 = sbr.rel (%p344) target = $region60
      $region59: #{tpu_custom_call.1} parent=5 // pred_region
        %s348 = ssub.s32 %s19, 1
        %s349 = smul.u32 63, %s24
        %s350 = ssub.s32 125, %s349
        %p351 = scmp.lt.s32.totalorder %s350, 63
        %s352 = scalar_select %p351, %s350, 63
        %s353 = smul.u32 128, %s352
        %p354 = scmp.lt.s32.totalorder %s349, 124
        %s355 = scalar_select %p354, %s349, 124
        %s356 = smul.addr %s355, 8
        %s357 = scalar_lea.vmem %s0, %s356
        %p358 = pneg %p45
        %p359 = pneg %p42
        %s360 = smul.u32 63, %s24
        %s361 = ssub.s32 125, %s360
        %p362 = scmp.lt.s32.totalorder %s361, 63
        %s363 = scalar_select %p362, %s361, 63
        %s364 = smul.u32 128, %s363
        %p365 = scmp.lt.s32.totalorder %s360, 124
        %s366 = scalar_select %p365, %s360, 124
        %s367 = smul.addr %s366, 8
        %s368 = scalar_lea.vmem %s1, %s367
        %p369 = pneg %p71
        %p370 = pneg %p68
        %p371 = pneg %p92
        %p372 = pneg %p89
        %p373 = pneg %p113
        %p374 = pneg %p110
        %p375 = pneg %p134
        %p376 = pneg %p131
        %p377 = pneg %p155
        %p378 = pneg %p152
        %p379 = pneg %p176
        %p380 = pneg %p173
        %p381 = pneg %p197
        %p382 = pneg %p194
        %p383 = pneg %p218
        %p384 = pneg %p215
        %p385 = pneg %p239
        %p386 = pneg %p236
        %p387 = pneg %p265
        %p388 = pneg %p262
        %s389 = sand.u32 %s252, 1
        %s390 = scalar_lea.sflag [#allocation3], %s389
        %s391 = sand.u32 %s252, 1
        %s392 = smul.addr %s391, 504
        %s393 = scalar_lea.vmem [#allocation2], %s392
        %s394 = smul.u32 63, %s24
        %s395 = ssub.s32 125, %s394
        %p396 = scmp.lt.s32.totalorder %s395, 63
        %s397 = scalar_select %p396, %s395, 63
        %s398 = smul.u32 128, %s397
        %p399 = scmp.lt.s32.totalorder %s394, 124
        %s400 = scalar_select %p399, %s394, 124
        %s401 = smul.addr %s400, 8
        %s402 = scalar_lea.vmem %s0, %s401
        %s403 = smul.u32 63, %s24
        %s404 = ssub.s32 125, %s403
        %p405 = scmp.lt.s32.totalorder %s404, 63
        %s406 = scalar_select %p405, %s404, 63
        %s407 = smul.u32 128, %s406
        %s408 = smul.u32 63, %s24
        %s409 = ssub.s32 125, %s408
        %p410 = scmp.lt.s32.totalorder %s409, 63
        %s411 = scalar_select %p410, %s409, 63
        %s412 = smul.u32 128, %s411
        %p413 = scmp.lt.s32.totalorder %s408, 124
        %s414 = scalar_select %p413, %s408, 124
        %s415 = smul.addr %s414, 8
        %s416 = scalar_lea.vmem %s1, %s415
        %s417 = smul.u32 63, %s24
        %s418 = ssub.s32 125, %s417
        %p419 = scmp.lt.s32.totalorder %s418, 63
        %s420 = scalar_select %p419, %s418, 63
        %s421 = smul.u32 128, %s420
        %s422 = smul.u32 63, %s24
        %s423 = ssub.s32 125, %s422
        %p424 = scmp.lt.s32.totalorder %s423, 63
        %s425 = scalar_select %p424, %s423, 63
        %s426 = smul.u32 128, %s425
        %v427 = vld [vmem:[%s402] sm:$0xff]
        %v428 = vld [vmem:[%s402 + $0x8] sm:$0xff]
        %v429 = vld [vmem:[%s402 + $0x10] sm:$0xff]
        %v430 = vld [vmem:[%s402 + $0x18] sm:$0xff]
        %v431 = vld [vmem:[%s402 + $0x20] sm:$0xff]
        %v432 = vld [vmem:[%s402 + $0x28] sm:$0xff]
        %v433 = vld [vmem:[%s402 + $0x30] sm:$0xff]
        %v434 = vld [vmem:[%s402 + $0x38] sm:$0xff]
        %v435 = vld [vmem:[%s402 + $0x40] sm:$0xff]
        %v436 = vld [vmem:[%s402 + $0x48] sm:$0xff]
        %v437 = vld [vmem:[%s402 + $0x50] sm:$0xff]
        %v438 = vld [vmem:[%s402 + $0x58] sm:$0xff]
        %v439 = vld [vmem:[%s402 + $0x60] sm:$0xff]
        %v440 = vld [vmem:[%s402 + $0x68] sm:$0xff]
        %v441 = vld [vmem:[%s402 + $0x70] sm:$0xff]
        %v442 = vld [vmem:[%s402 + $0x78] sm:$0xff]
        %v443 = vld [vmem:[%s402 + $0x80] sm:$0xff]
        %v444 = vld [vmem:[%s402 + $0x88] sm:$0xff]
        %v445 = vld [vmem:[%s402 + $0x90] sm:$0xff]
        %v446 = vld [vmem:[%s402 + $0x98] sm:$0xff]
        %v447 = vld [vmem:[%s402 + $0xa0] sm:$0xff]
        %v448 = vld [vmem:[%s402 + $0xa8] sm:$0xff]
        %v449 = vld [vmem:[%s402 + $0xb0] sm:$0xff]
        %v450 = vld [vmem:[%s402 + $0xb8] sm:$0xff]
        %v451 = vld [vmem:[%s402 + $0xc0] sm:$0xff]
        %v452 = vld [vmem:[%s402 + $0xc8] sm:$0xff]
        %v453 = vld [vmem:[%s402 + $0xd0] sm:$0xff]
        %v454 = vld [vmem:[%s402 + $0xd8] sm:$0xff]
        %v455 = vld [vmem:[%s402 + $0xe0] sm:$0xff]
        %v456 = vld [vmem:[%s402 + $0xe8] sm:$0xff]
        %v457 = vld [vmem:[%s402 + $0xf0] sm:$0xff]
        %v458 = vld [vmem:[%s402 + $0xf8] sm:$0xff]
        %v459 = vld [vmem:[%s402 + $0x100] sm:$0xff]
        %v460 = vld [vmem:[%s402 + $0x108] sm:$0xff]
        %v461 = vld [vmem:[%s402 + $0x110] sm:$0xff]
        %v462 = vld [vmem:[%s402 + $0x118] sm:$0xff]
        %v463 = vld [vmem:[%s402 + $0x120] sm:$0xff]
        %v464 = vld [vmem:[%s402 + $0x128] sm:$0xff]
        %v465 = vld [vmem:[%s402 + $0x130] sm:$0xff]
        %v466 = vld [vmem:[%s402 + $0x138] sm:$0xff]
        %v467 = vld [vmem:[%s402 + $0x140] sm:$0xff]
        %v468 = vld [vmem:[%s402 + $0x148] sm:$0xff]
        %v469 = vld [vmem:[%s402 + $0x150] sm:$0xff]
        %v470 = vld [vmem:[%s402 + $0x158] sm:$0xff]
        %v471 = vld [vmem:[%s402 + $0x160] sm:$0xff]
        %v472 = vld [vmem:[%s402 + $0x168] sm:$0xff]
        %v473 = vld [vmem:[%s402 + $0x170] sm:$0xff]
        %v474 = vld [vmem:[%s402 + $0x178] sm:$0xff]
        %v475 = vld [vmem:[%s402 + $0x180] sm:$0xff]
        %v476 = vld [vmem:[%s402 + $0x188] sm:$0xff]
        %v477 = vld [vmem:[%s402 + $0x190] sm:$0xff]
        %v478 = vld [vmem:[%s402 + $0x198] sm:$0xff]
        %v479 = vld [vmem:[%s402 + $0x1a0] sm:$0xff]
        %v480 = vld [vmem:[%s402 + $0x1a8] sm:$0xff]
        %v481 = vld [vmem:[%s402 + $0x1b0] sm:$0xff]
        %v482 = vld [vmem:[%s402 + $0x1b8] sm:$0xff]
        %v483 = vld [vmem:[%s402 + $0x1c0] sm:$0xff]
        %v484 = vld [vmem:[%s402 + $0x1c8] sm:$0xff]
        %v485 = vld [vmem:[%s402 + $0x1d0] sm:$0xff]
        %v486 = vld [vmem:[%s402 + $0x1d8] sm:$0xff]
        %v487 = vld [vmem:[%s402 + $0x1e0] sm:$0xff]
        %v488 = vld [vmem:[%s402 + $0x1e8] sm:$0xff]
        %v489 = vld [vmem:[%s402 + $0x1f0] sm:$0xff]
        %v490 = vld [vmem:[%s2] sm:$0xff]
        %v491 = vld [vmem:[%s2 + $0x8] sm:$0xff]
        %v492 = vld [vmem:[%s3] sm:$0x1]
        %v494 = vlaneseq
        %v495 = vshrl.u32 %v494, 7
        %v496 = vsub.s32 0, %v495
        %v497 = vrot.slane %v492, %v496
        %vm499 = vcmask 130048
        %v501 = vsel %vm499, %v427, 0
        %v504 = vsel %vm499, %v428, 0
        %v507 = vsel %vm499, %v429, 0
        %v510 = vsel %vm499, %v430, 0
        %v513 = vsel %vm499, %v431, 0
        %v516 = vsel %vm499, %v432, 0
        %v519 = vsel %vm499, %v433, 0
        %v522 = vsel %vm499, %v434, 0
        %v525 = vsel %vm499, %v435, 0
        %v528 = vsel %vm499, %v436, 0
        %v531 = vsel %vm499, %v437, 0
        %v534 = vsel %vm499, %v438, 0
        %v537 = vsel %vm499, %v439, 0
        %v540 = vsel %vm499, %v440, 0
        %v543 = vsel %vm499, %v441, 0
        %v546 = vsel %vm499, %v442, 0
        %v549 = vsel %vm499, %v443, 0
        %v552 = vsel %vm499, %v444, 0
        %v555 = vsel %vm499, %v445, 0
        %v558 = vsel %vm499, %v446, 0
        %v561 = vsel %vm499, %v447, 0
        %v564 = vsel %vm499, %v448, 0
        %v567 = vsel %vm499, %v449, 0
        %v570 = vsel %vm499, %v450, 0
        %v573 = vsel %vm499, %v451, 0
        %v576 = vsel %vm499, %v452, 0
        %v579 = vsel %vm499, %v453, 0
        %v582 = vsel %vm499, %v454, 0
        %v585 = vsel %vm499, %v455, 0
        %v588 = vsel %vm499, %v456, 0
        %v591 = vsel %vm499, %v457, 0
        %v594 = vsel %vm499, %v458, 0
        %v597 = vsel %vm499, %v459, 0
        %v600 = vsel %vm499, %v460, 0
        %v603 = vsel %vm499, %v461, 0
        %v606 = vsel %vm499, %v462, 0
        %v609 = vsel %vm499, %v463, 0
        %v612 = vsel %vm499, %v464, 0
        %v615 = vsel %vm499, %v465, 0
        %v618 = vsel %vm499, %v466, 0
        %v621 = vsel %vm499, %v467, 0
        %v624 = vsel %vm499, %v468, 0
        %v627 = vsel %vm499, %v469, 0
        %v630 = vsel %vm499, %v470, 0
        %v633 = vsel %vm499, %v471, 0
        %v636 = vsel %vm499, %v472, 0
        %v639 = vsel %vm499, %v473, 0
        %v642 = vsel %vm499, %v474, 0
        %v645 = vsel %vm499, %v475, 0
        %v648 = vsel %vm499, %v476, 0
        %v651 = vsel %vm499, %v477, 0
        %v654 = vsel %vm499, %v478, 0
        %v657 = vsel %vm499, %v479, 0
        %v660 = vsel %vm499, %v480, 0
        %v663 = vsel %vm499, %v481, 0
        %v666 = vsel %vm499, %v482, 0
        %v669 = vsel %vm499, %v483, 0
        %v672 = vsel %vm499, %v484, 0
        %v675 = vsel %vm499, %v485, 0
        %v678 = vsel %vm499, %v486, 0
        %v681 = vsel %vm499, %v487, 0
        %v684 = vsel %vm499, %v488, 0
        %v687 = vsel %vm499, %v489, 0
        %689 = vmatprep.subr.mxu0 0.0
        %690 = vmatpush1.msra.mxu0 %v490
        %691 = vmatprep.subr.mxu0 0.0
        %692 = vmatpush1.msra.mxu0 %v491
        %693 = vmatprep.subr.mxu0 0.0
        %694 = vmatpush1.msra.mxu0 0.0
        %695 = vmatprep.subr.mxu0 0.0
        %696 = vmatpush1.msra.mxu0 0.0
        %697 = vmatprep.subr.mxu0 0.0
        %698 = vmatpush1.msra.mxu0 0.0
        %699 = vmatprep.subr.mxu0 0.0
        %700 = vmatpush1.msra.mxu0 0.0
        %701 = vmatprep.subr.mxu0 0.0
        %702 = vmatpush1.msra.mxu0 0.0
        %703 = vmatprep.subr.mxu0 0.0
        %704 = vmatpush1.msra.mxu0 0.0
        %705 = vmatprep.subr.mxu0 0.0
        %706 = vmatpush1.msra.mxu0 0.0
        %707 = vmatprep.subr.mxu0 0.0
        %708 = vmatpush1.msra.mxu0 0.0
        %709 = vmatprep.subr.mxu0 0.0
        %710 = vmatpush1.msra.mxu0 0.0
        %711 = vmatprep.subr.mxu0 0.0
        %712 = vmatpush1.msra.mxu0 0.0
        %713 = vmatprep.subr.mxu0 0.0
        %714 = vmatpush1.msra.mxu0 0.0
        %715 = vmatprep.subr.mxu0 0.0
        %716 = vmatpush1.msra.mxu0 0.0
        %717 = vmatprep.subr.mxu0 0.0
        %718 = vmatpush1.msra.mxu0 0.0
        %719 = vmatprep.subr.mxu0 0.0
        %720 = vmatpush1.msra.mxu0 0.0
        %721 = vmatprep.subr.mxu0 0.0
        %722 = vmatpush1.msra.mxu0 0.0
        %723 = vmatprep.subr.mxu0 0.0
        %724 = vmatpush1.msra.mxu0 0.0
        %725 = vmatprep.subr.mxu0 0.0
        %726 = vmatpush1.msra.mxu0 0.0
        %727 = vmatprep.subr.mxu0 0.0
        %728 = vmatpush1.msra.mxu0 0.0
        %729 = vmatprep.subr.mxu0 0.0
        %730 = vmatpush1.msra.mxu0 0.0
        %731 = vmatprep.subr.mxu0 0.0
        %732 = vmatpush1.msra.mxu0 0.0
        %733 = vmatprep.subr.mxu0 0.0
        %734 = vmatpush1.msra.mxu0 0.0
        %735 = vmatprep.subr.mxu0 0.0
        %736 = vmatpush1.msra.mxu0 0.0
        %737 = vmatprep.subr.mxu0 0.0
        %738 = vmatpush1.msra.mxu0 0.0
        %739 = vmatprep.subr.mxu0 0.0
        %740 = vmatpush1.msra.mxu0 0.0
        %741 = vmatprep.subr.mxu0 0.0
        %742 = vmatpush1.msra.mxu0 0.0
        %743 = vmatprep.subr.mxu0 0.0
        %744 = vmatpush1.msra.mxu0 0.0
        %745 = vmatprep.subr.mxu0 0.0
        %746 = vmatpush1.msra.mxu0 0.0
        %747 = vmatprep.subr.mxu0 0.0
        %748 = vmatpush1.msra.mxu0 0.0
        %749 = vmatprep.subr.mxu0 0.0
        %750 = vmatpush1.msra.mxu0 0.0
        %751 = vmatprep.subr.mxu0 0.0
        %752 = vmatpush1.msra.mxu0 0.0
        %753 = vmatprep.mubr.f32.mxu0 0.0
        %754 = vmatmul.mubr.f32.gmra.mrb[0].mxu0 %v501
        %v755 = vpop.f32.mrb[0].mxu0
        %v756 = vadd.f32 %v497, %v755
        %v757 = vpop.f32.mrb[0].mxu0
        %758 = vmatprep.mubr.f32.mxu0 0.0
        %759 = vmatmul.mubr.f32.gmra.mrb[0].mxu0 %v504
        %v760 = vpop.f32.mrb[0].mxu0
        %v761 = vadd.f32 %v497, %v760
        %v762 = vpop.f32.mrb[0].mxu0
        %763 = vmatprep.mubr.f32.mxu0 0.0
        %764 = vmatmul.mubr.f32.gmra.mrb[0].mxu0 %v507
        %v765 = vpop.f32.mrb[0].mxu0
        %v766 = vadd.f32 %v497, %v765
        %v767 = vpop.f32.mrb[0].mxu0
        %768 = vmatprep.mubr.f32.mxu0 0.0
        %769 = vmatmul.mubr.f32.gmra.mrb[0].mxu0 %v510
        %v770 = vpop.f32.mrb[0].mxu0
        %v771 = vadd.f32 %v497, %v770
        %v772 = vpop.f32.mrb[0].mxu0
        %773 = vmatprep.mubr.f32.mxu0 0.0
        %774 = vmatmul.mubr.f32.gmra.mrb[0].mxu0 %v513
        %v775 = vpop.f32.mrb[0].mxu0
        %v776 = vadd.f32 %v497, %v775
        %v777 = vpop.f32.mrb[0].mxu0
        %778 = vmatprep.mubr.f32.mxu0 0.0
        %779 = vmatmul.mubr.f32.gmra.mrb[0].mxu0 %v516
        %v780 = vpop.f32.mrb[0].mxu0
        %v781 = vadd.f32 %v497, %v780
        %v782 = vpop.f32.mrb[0].mxu0
        %783 = vmatprep.mubr.f32.mxu0 0.0
        %784 = vmatmul.mubr.f32.gmra.mrb[0].mxu0 %v519
        %v785 = vpop.f32.mrb[0].mxu0
        %v786 = vadd.f32 %v497, %v785
        %v787 = vpop.f32.mrb[0].mxu0
        %788 = vmatprep.mubr.f32.mxu0 0.0
        %789 = vmatmul.mubr.f32.gmra.mrb[0].mxu0 %v522
        %v790 = vpop.f32.mrb[0].mxu0
        %v791 = vadd.f32 %v497, %v790
        %v792 = vpop.f32.mrb[0].mxu0
        %793 = vmatprep.mubr.f32.mxu0 0.0
        %794 = vmatmul.mubr.f32.gmra.mrb[0].mxu0 %v525
        %v795 = vpop.f32.mrb[0].mxu0
        %v796 = vadd.f32 %v497, %v795
        %v797 = vpop.f32.mrb[0].mxu0
        %798 = vmatprep.mubr.f32.mxu0 0.0
        %799 = vmatmul.mubr.f32.gmra.mrb[0].mxu0 %v528
        %v800 = vpop.f32.mrb[0].mxu0
        %v801 = vadd.f32 %v497, %v800
        %v802 = vpop.f32.mrb[0].mxu0
        %803 = vmatprep.mubr.f32.mxu0 0.0
        %804 = vmatmul.mubr.f32.gmra.mrb[0].mxu0 %v531
        %v805 = vpop.f32.mrb[0].mxu0
        %v806 = vadd.f32 %v497, %v805
        %v807 = vpop.f32.mrb[0].mxu0
        %808 = vmatprep.mubr.f32.mxu0 0.0
        %809 = vmatmul.mubr.f32.gmra.mrb[0].mxu0 %v534
        %v810 = vpop.f32.mrb[0].mxu0
        %v811 = vadd.f32 %v497, %v810
        %v812 = vpop.f32.mrb[0].mxu0
        %813 = vmatprep.mubr.f32.mxu0 0.0
        %814 = vmatmul.mubr.f32.gmra.mrb[0].mxu0 %v537
        %v815 = vpop.f32.mrb[0].mxu0
        %v816 = vadd.f32 %v497, %v815
        %v817 = vpop.f32.mrb[0].mxu0
        %818 = vmatprep.mubr.f32.mxu0 0.0
        %819 = vmatmul.mubr.f32.gmra.mrb[0].mxu0 %v540
        %v820 = vpop.f32.mrb[0].mxu0
        %v821 = vadd.f32 %v497, %v820
        %v822 = vpop.f32.mrb[0].mxu0
        %823 = vmatprep.mubr.f32.mxu0 0.0
        %824 = vmatmul.mubr.f32.gmra.mrb[0].mxu0 %v543
        %v825 = vpop.f32.mrb[0].mxu0
        %v826 = vadd.f32 %v497, %v825
        %v827 = vpop.f32.mrb[0].mxu0
        %828 = vmatprep.mubr.f32.mxu0 0.0
        %829 = vmatmul.mubr.f32.gmra.mrb[0].mxu0 %v546
        %v830 = vpop.f32.mrb[0].mxu0
        %v831 = vadd.f32 %v497, %v830
        %v832 = vpop.f32.mrb[0].mxu0
        %833 = vmatprep.mubr.f32.mxu0 0.0
        %834 = vmatmul.mubr.f32.gmra.mrb[0].mxu0 %v549
        %v835 = vpop.f32.mrb[0].mxu0
        %v836 = vadd.f32 %v497, %v835
        %v837 = vpop.f32.mrb[0].mxu0
        %838 = vmatprep.mubr.f32.mxu0 0.0
        %839 = vmatmul.mubr.f32.gmra.mrb[0].mxu0 %v552
        %v840 = vpop.f32.mrb[0].mxu0
        %v841 = vadd.f32 %v497, %v840
        %v842 = vpop.f32.mrb[0].mxu0
        %843 = vmatprep.mubr.f32.mxu0 0.0
        %844 = vmatmul.mubr.f32.gmra.mrb[0].mxu0 %v555
        %v845 = vpop.f32.mrb[0].mxu0
        %v846 = vadd.f32 %v497, %v845
        %v847 = vpop.f32.mrb[0].mxu0
        %848 = vmatprep.mubr.f32.mxu0 0.0
        %849 = vmatmul.mubr.f32.gmra.mrb[0].mxu0 %v558
        %v850 = vpop.f32.mrb[0].mxu0
        %v851 = vadd.f32 %v497, %v850
        %v852 = vpop.f32.mrb[0].mxu0
        %853 = vmatprep.mubr.f32.mxu0 0.0
        %854 = vmatmul.mubr.f32.gmra.mrb[0].mxu0 %v561
        %v855 = vpop.f32.mrb[0].mxu0
        %v856 = vadd.f32 %v497, %v855
        %v857 = vpop.f32.mrb[0].mxu0
        %858 = vmatprep.mubr.f32.mxu0 0.0
        %859 = vmatmul.mubr.f32.gmra.mrb[0].mxu0 %v564
        %v860 = vpop.f32.mrb[0].mxu0
        %v861 = vadd.f32 %v497, %v860
        %v862 = vpop.f32.mrb[0].mxu0
        %863 = vmatprep.mubr.f32.mxu0 0.0
        %864 = vmatmul.mubr.f32.gmra.mrb[0].mxu0 %v567
        %v865 = vpop.f32.mrb[0].mxu0
        %v866 = vadd.f32 %v497, %v865
        %v867 = vpop.f32.mrb[0].mxu0
        %868 = vmatprep.mubr.f32.mxu0 0.0
        %869 = vmatmul.mubr.f32.gmra.mrb[0].mxu0 %v570
        %v870 = vpop.f32.mrb[0].mxu0
        %v871 = vadd.f32 %v497, %v870
        %v872 = vpop.f32.mrb[0].mxu0
        %873 = vmatprep.mubr.f32.mxu0 0.0
        %874 = vmatmul.mubr.f32.gmra.mrb[0].mxu0 %v573
        %v875 = vpop.f32.mrb[0].mxu0
        %v876 = vadd.f32 %v497, %v875
        %v877 = vpop.f32.mrb[0].mxu0
        %878 = vmatprep.mubr.f32.mxu0 0.0
        %879 = vmatmul.mubr.f32.gmra.mrb[0].mxu0 %v576
        %v880 = vpop.f32.mrb[0].mxu0
        %v881 = vadd.f32 %v497, %v880
        %v882 = vpop.f32.mrb[0].mxu0
        %883 = vmatprep.mubr.f32.mxu0 0.0
        %884 = vmatmul.mubr.f32.gmra.mrb[0].mxu0 %v579
        %v885 = vpop.f32.mrb[0].mxu0
        %v886 = vadd.f32 %v497, %v885
        %v887 = vpop.f32.mrb[0].mxu0
        %888 = vmatprep.mubr.f32.mxu0 0.0
        %889 = vmatmul.mubr.f32.gmra.mrb[0].mxu0 %v582
        %v890 = vpop.f32.mrb[0].mxu0
        %v891 = vadd.f32 %v497, %v890
        %v892 = vpop.f32.mrb[0].mxu0
        %893 = vmatprep.mubr.f32.mxu0 0.0
        %894 = vmatmul.mubr.f32.gmra.mrb[0].mxu0 %v585
        %v895 = vpop.f32.mrb[0].mxu0
        %v896 = vadd.f32 %v497, %v895
        %v897 = vpop.f32.mrb[0].mxu0
        %898 = vmatprep.mubr.f32.mxu0 0.0
        %899 = vmatmul.mubr.f32.gmra.mrb[0].mxu0 %v588
        %v900 = vpop.f32.mrb[0].mxu0
        %v901 = vadd.f32 %v497, %v900
        %v902 = vpop.f32.mrb[0].mxu0
        %903 = vmatprep.mubr.f32.mxu0 0.0
        %904 = vmatmul.mubr.f32.gmra.mrb[0].mxu0 %v591
        %v905 = vpop.f32.mrb[0].mxu0
        %v906 = vadd.f32 %v497, %v905
        %v907 = vpop.f32.mrb[0].mxu0
        %908 = vmatprep.mubr.f32.mxu0 0.0
        %909 = vmatmul.mubr.f32.gmra.mrb[0].mxu0 %v594
        %v910 = vpop.f32.mrb[0].mxu0
        %v911 = vadd.f32 %v497, %v910
        %v912 = vpop.f32.mrb[0].mxu0
        %913 = vmatprep.mubr.f32.mxu0 0.0
        %914 = vmatmul.mubr.f32.gmra.mrb[0].mxu0 %v597
        %v915 = vpop.f32.mrb[0].mxu0
        %v916 = vadd.f32 %v497, %v915
        %v917 = vpop.f32.mrb[0].mxu0
        %918 = vmatprep.mubr.f32.mxu0 0.0
        %919 = vmatmul.mubr.f32.gmra.mrb[0].mxu0 %v600
        %v920 = vpop.f32.mrb[0].mxu0
        %v921 = vadd.f32 %v497, %v920
        %v922 = vpop.f32.mrb[0].mxu0
        %923 = vmatprep.mubr.f32.mxu0 0.0
        %924 = vmatmul.mubr.f32.gmra.mrb[0].mxu0 %v603
        %v925 = vpop.f32.mrb[0].mxu0
        %v926 = vadd.f32 %v497, %v925
        %v927 = vpop.f32.mrb[0].mxu0
        %928 = vmatprep.mubr.f32.mxu0 0.0
        %929 = vmatmul.mubr.f32.gmra.mrb[0].mxu0 %v606
        %v930 = vpop.f32.mrb[0].mxu0
        %v931 = vadd.f32 %v497, %v930
        %v932 = vpop.f32.mrb[0].mxu0
        %933 = vmatprep.mubr.f32.mxu0 0.0
        %934 = vmatmul.mubr.f32.gmra.mrb[0].mxu0 %v609
        %v935 = vpop.f32.mrb[0].mxu0
        %v936 = vadd.f32 %v497, %v935
        %v937 = vpop.f32.mrb[0].mxu0
        %938 = vmatprep.mubr.f32.mxu0 0.0
        %939 = vmatmul.mubr.f32.gmra.mrb[0].mxu0 %v612
        %v940 = vpop.f32.mrb[0].mxu0
        %v941 = vadd.f32 %v497, %v940
        %v942 = vpop.f32.mrb[0].mxu0
        %943 = vmatprep.mubr.f32.mxu0 0.0
        %944 = vmatmul.mubr.f32.gmra.mrb[0].mxu0 %v615
        %v945 = vpop.f32.mrb[0].mxu0
        %v946 = vadd.f32 %v497, %v945
        %v947 = vpop.f32.mrb[0].mxu0
        %948 = vmatprep.mubr.f32.mxu0 0.0
        %949 = vmatmul.mubr.f32.gmra.mrb[0].mxu0 %v618
        %v950 = vpop.f32.mrb[0].mxu0
        %v951 = vadd.f32 %v497, %v950
        %v952 = vpop.f32.mrb[0].mxu0
        %953 = vmatprep.mubr.f32.mxu0 0.0
        %954 = vmatmul.mubr.f32.gmra.mrb[0].mxu0 %v621
        %v955 = vpop.f32.mrb[0].mxu0
        %v956 = vadd.f32 %v497, %v955
        %v957 = vpop.f32.mrb[0].mxu0
        %958 = vmatprep.mubr.f32.mxu0 0.0
        %959 = vmatmul.mubr.f32.gmra.mrb[0].mxu0 %v624
        %v960 = vpop.f32.mrb[0].mxu0
        %v961 = vadd.f32 %v497, %v960
        %v962 = vpop.f32.mrb[0].mxu0
        %963 = vmatprep.mubr.f32.mxu0 0.0
        %964 = vmatmul.mubr.f32.gmra.mrb[0].mxu0 %v627
        %v965 = vpop.f32.mrb[0].mxu0
        %v966 = vadd.f32 %v497, %v965
        %v967 = vpop.f32.mrb[0].mxu0
        %968 = vmatprep.mubr.f32.mxu0 0.0
        %969 = vmatmul.mubr.f32.gmra.mrb[0].mxu0 %v630
        %v970 = vpop.f32.mrb[0].mxu0
        %v971 = vadd.f32 %v497, %v970
        %v972 = vpop.f32.mrb[0].mxu0
        %973 = vmatprep.mubr.f32.mxu0 0.0
        %974 = vmatmul.mubr.f32.gmra.mrb[0].mxu0 %v633
        %v975 = vpop.f32.mrb[0].mxu0
        %v976 = vadd.f32 %v497, %v975
        %v977 = vpop.f32.mrb[0].mxu0
        %978 = vmatprep.mubr.f32.mxu0 0.0
        %979 = vmatmul.mubr.f32.gmra.mrb[0].mxu0 %v636
        %v980 = vpop.f32.mrb[0].mxu0
        %v981 = vadd.f32 %v497, %v980
        %v982 = vpop.f32.mrb[0].mxu0
        %983 = vmatprep.mubr.f32.mxu0 0.0
        %984 = vmatmul.mubr.f32.gmra.mrb[0].mxu0 %v639
        %v985 = vpop.f32.mrb[0].mxu0
        %v986 = vadd.f32 %v497, %v985
        %v987 = vpop.f32.mrb[0].mxu0
        %988 = vmatprep.mubr.f32.mxu0 0.0
        %989 = vmatmul.mubr.f32.gmra.mrb[0].mxu0 %v642
        %v990 = vpop.f32.mrb[0].mxu0
        %v991 = vadd.f32 %v497, %v990
        %v992 = vpop.f32.mrb[0].mxu0
        %993 = vmatprep.mubr.f32.mxu0 0.0
        %994 = vmatmul.mubr.f32.gmra.mrb[0].mxu0 %v645
        %v995 = vpop.f32.mrb[0].mxu0
        %v996 = vadd.f32 %v497, %v995
        %v997 = vpop.f32.mrb[0].mxu0
        %998 = vmatprep.mubr.f32.mxu0 0.0
        %999 = vmatmul.mubr.f32.gmra.mrb[0].mxu0 %v648
        %v1000 = vpop.f32.mrb[0].mxu0
        %v1001 = vadd.f32 %v497, %v1000
        %v1002 = vpop.f32.mrb[0].mxu0
        %1003 = vmatprep.mubr.f32.mxu0 0.0
        %1004 = vmatmul.mubr.f32.gmra.mrb[0].mxu0 %v651
        %v1005 = vpop.f32.mrb[0].mxu0
        %v1006 = vadd.f32 %v497, %v1005
        %v1007 = vpop.f32.mrb[0].mxu0
        %1008 = vmatprep.mubr.f32.mxu0 0.0
        %1009 = vmatmul.mubr.f32.gmra.mrb[0].mxu0 %v654
        %v1010 = vpop.f32.mrb[0].mxu0
        %v1011 = vadd.f32 %v497, %v1010
        %v1012 = vpop.f32.mrb[0].mxu0
        %1013 = vmatprep.mubr.f32.mxu0 0.0
        %1014 = vmatmul.mubr.f32.gmra.mrb[0].mxu0 %v657
        %v1015 = vpop.f32.mrb[0].mxu0
        %v1016 = vadd.f32 %v497, %v1015
        %v1017 = vpop.f32.mrb[0].mxu0
        %1018 = vmatprep.mubr.f32.mxu0 0.0
        %1019 = vmatmul.mubr.f32.gmra.mrb[0].mxu0 %v660
        %v1020 = vpop.f32.mrb[0].mxu0
        %v1021 = vadd.f32 %v497, %v1020
        %v1022 = vpop.f32.mrb[0].mxu0
        %1023 = vmatprep.mubr.f32.mxu0 0.0
        %1024 = vmatmul.mubr.f32.gmra.mrb[0].mxu0 %v663
        %v1025 = vpop.f32.mrb[0].mxu0
        %v1026 = vadd.f32 %v497, %v1025
        %v1027 = vpop.f32.mrb[0].mxu0
        %1028 = vmatprep.mubr.f32.mxu0 0.0
        %1029 = vmatmul.mubr.f32.gmra.mrb[0].mxu0 %v666
        %v1030 = vpop.f32.mrb[0].mxu0
        %v1031 = vadd.f32 %v497, %v1030
        %v1032 = vpop.f32.mrb[0].mxu0
        %1033 = vmatprep.mubr.f32.mxu0 0.0
        %1034 = vmatmul.mubr.f32.gmra.mrb[0].mxu0 %v669
        %v1035 = vpop.f32.mrb[0].mxu0
        %v1036 = vadd.f32 %v497, %v1035
        %v1037 = vpop.f32.mrb[0].mxu0
        %1038 = vmatprep.mubr.f32.mxu0 0.0
        %1039 = vmatmul.mubr.f32.gmra.mrb[0].mxu0 %v672
        %v1040 = vpop.f32.mrb[0].mxu0
        %v1041 = vadd.f32 %v497, %v1040
        %v1042 = vpop.f32.mrb[0].mxu0
        %1043 = vmatprep.mubr.f32.mxu0 0.0
        %1044 = vmatmul.mubr.f32.gmra.mrb[0].mxu0 %v675
        %v1045 = vpop.f32.mrb[0].mxu0
        %v1046 = vadd.f32 %v497, %v1045
        %v1047 = vpop.f32.mrb[0].mxu0
        %1048 = vmatprep.mubr.f32.mxu0 0.0
        %1049 = vmatmul.mubr.f32.gmra.mrb[0].mxu0 %v678
        %v1050 = vpop.f32.mrb[0].mxu0
        %v1051 = vadd.f32 %v497, %v1050
        %v1052 = vpop.f32.mrb[0].mxu0
        %1053 = vmatprep.mubr.f32.mxu0 0.0
        %1054 = vmatmul.mubr.f32.gmra.mrb[0].mxu0 %v681
        %v1055 = vpop.f32.mrb[0].mxu0
        %v1056 = vadd.f32 %v497, %v1055
        %v1057 = vpop.f32.mrb[0].mxu0
        %1058 = vmatprep.mubr.f32.mxu0 0.0
        %1059 = vmatmul.mubr.f32.gmra.mrb[0].mxu0 %v684
        %v1060 = vpop.f32.mrb[0].mxu0
        %v1061 = vadd.f32 %v497, %v1060
        %v1062 = vpop.f32.mrb[0].mxu0
        %1063 = vmatprep.mubr.f32.mxu0 0.0
        %1064 = vmatmul.mubr.f32.gmra.mrb[0].mxu0 %v687
        %v1065 = vpop.f32.mrb[0].mxu0
        %v1066 = vadd.f32 %v497, %v1065
        %v1067 = vpop.f32.mrb[0].mxu0
        %1068 = vdwg.mxu0
        %v1069 = vtanh.pop %v756
        %v1070 = vtanh.pop %v761
        %v1071 = vtanh.pop %v766
        %v1072 = vtanh.pop %v771
        %v1073 = vtanh.pop %v776
        %v1074 = vtanh.pop %v781
        %v1075 = vtanh.pop %v786
        %v1076 = vtanh.pop %v791
        %v1077 = vtanh.pop %v796
        %v1078 = vtanh.pop %v801
        %v1079 = vtanh.pop %v806
        %v1080 = vtanh.pop %v811
        %v1081 = vtanh.pop %v816
        %v1082 = vtanh.pop %v821
        %v1083 = vtanh.pop %v826
        %v1084 = vtanh.pop %v831
        %v1085 = vtanh.pop %v836
        %v1086 = vtanh.pop %v841
        %v1087 = vtanh.pop %v846
        %v1088 = vtanh.pop %v851
        %v1089 = vtanh.pop %v856
        %v1090 = vtanh.pop %v861
        %v1091 = vtanh.pop %v866
        %v1092 = vtanh.pop %v871
        %v1093 = vtanh.pop %v876
        %v1094 = vtanh.pop %v881
        %v1095 = vtanh.pop %v886
        %v1096 = vtanh.pop %v891
        %v1097 = vtanh.pop %v896
        %v1098 = vtanh.pop %v901
        %v1099 = vtanh.pop %v906
        %v1100 = vtanh.pop %v911
        %v1101 = vtanh.pop %v916
        %v1102 = vtanh.pop %v921
        %v1103 = vtanh.pop %v926
        %v1104 = vtanh.pop %v931
        %v1105 = vtanh.pop %v936
        %v1106 = vtanh.pop %v941
        %v1107 = vtanh.pop %v946
        %v1108 = vtanh.pop %v951
        %v1109 = vtanh.pop %v956
        %v1110 = vtanh.pop %v961
        %v1111 = vtanh.pop %v966
        %v1112 = vtanh.pop %v971
        %v1113 = vtanh.pop %v976
        %v1114 = vtanh.pop %v981
        %v1115 = vtanh.pop %v986
        %v1116 = vtanh.pop %v991
        %v1117 = vtanh.pop %v996
        %v1118 = vtanh.pop %v1001
        %v1119 = vtanh.pop %v1006
        %v1120 = vtanh.pop %v1011
        %v1121 = vtanh.pop %v1016
        %v1122 = vtanh.pop %v1021
        %v1123 = vtanh.pop %v1026
        %v1124 = vtanh.pop %v1031
        %v1125 = vtanh.pop %v1036
        %v1126 = vtanh.pop %v1041
        %v1127 = vtanh.pop %v1046
        %v1128 = vtanh.pop %v1051
        %v1129 = vtanh.pop %v1056
        %v1130 = vtanh.pop %v1061
        %v1131 = vtanh.pop %v1066
        %v1132 = vld [vmem:[%s4] sm:$0xff]
        %v1133 = vld [vmem:[%s4 + $0x8] sm:$0xff]
        %v1134 = vld [vmem:[%s4 + $0x10] sm:$0xff]
        %v1135 = vld [vmem:[%s4 + $0x18] sm:$0xff]
        %v1136 = vld [vmem:[%s5] sm:$0x1]
        %v1138 = vlaneseq
        %v1139 = vshrl.u32 %v1138, 7
        %v1140 = vsub.s32 0, %v1139
        %v1141 = vrot.slane %v1136, %v1140
        %vm1143 = vcmask 261120
        %v1145 = vsel %vm1143, %v1069, 0
        %v1148 = vsel %vm1143, %v1070, 0
        %v1151 = vsel %vm1143, %v1071, 0
        %v1154 = vsel %vm1143, %v1072, 0
        %v1157 = vsel %vm1143, %v1073, 0
        %v1160 = vsel %vm1143, %v1074, 0
        %v1163 = vsel %vm1143, %v1075, 0
        %v1166 = vsel %vm1143, %v1076, 0
        %v1169 = vsel %vm1143, %v1077, 0
        %v1172 = vsel %vm1143, %v1078, 0
        %v1175 = vsel %vm1143, %v1079, 0
        %v1178 = vsel %vm1143, %v1080, 0
        %v1181 = vsel %vm1143, %v1081, 0
        %v1184 = vsel %vm1143, %v1082, 0
        %v1187 = vsel %vm1143, %v1083, 0
        %v1190 = vsel %vm1143, %v1084, 0
        %v1193 = vsel %vm1143, %v1085, 0
        %v1196 = vsel %vm1143, %v1086, 0
        %v1199 = vsel %vm1143, %v1087, 0
        %v1202 = vsel %vm1143, %v1088, 0
        %v1205 = vsel %vm1143, %v1089, 0
        %v1208 = vsel %vm1143, %v1090, 0
        %v1211 = vsel %vm1143, %v1091, 0
        %v1214 = vsel %vm1143, %v1092, 0
        %v1217 = vsel %vm1143, %v1093, 0
        %v1220 = vsel %vm1143, %v1094, 0
        %v1223 = vsel %vm1143, %v1095, 0
        %v1226 = vsel %vm1143, %v1096, 0
        %v1229 = vsel %vm1143, %v1097, 0
        %v1232 = vsel %vm1143, %v1098, 0
        %v1235 = vsel %vm1143, %v1099, 0
        %v1238 = vsel %vm1143, %v1100, 0
        %v1241 = vsel %vm1143, %v1101, 0
        %v1244 = vsel %vm1143, %v1102, 0
        %v1247 = vsel %vm1143, %v1103, 0
        %v1250 = vsel %vm1143, %v1104, 0
        %v1253 = vsel %vm1143, %v1105, 0
        %v1256 = vsel %vm1143, %v1106, 0
        %v1259 = vsel %vm1143, %v1107, 0
        %v1262 = vsel %vm1143, %v1108, 0
        %v1265 = vsel %vm1143, %v1109, 0
        %v1268 = vsel %vm1143, %v1110, 0
        %v1271 = vsel %vm1143, %v1111, 0
        %v1274 = vsel %vm1143, %v1112, 0
        %v1277 = vsel %vm1143, %v1113, 0
        %v1280 = vsel %vm1143, %v1114, 0
        %v1283 = vsel %vm1143, %v1115, 0
        %v1286 = vsel %vm1143, %v1116, 0
        %v1289 = vsel %vm1143, %v1117, 0
        %v1292 = vsel %vm1143, %v1118, 0
        %v1295 = vsel %vm1143, %v1119, 0
        %v1298 = vsel %vm1143, %v1120, 0
        %v1301 = vsel %vm1143, %v1121, 0
        %v1304 = vsel %vm1143, %v1122, 0
        %v1307 = vsel %vm1143, %v1123, 0
        %v1310 = vsel %vm1143, %v1124, 0
        %v1313 = vsel %vm1143, %v1125, 0
        %v1316 = vsel %vm1143, %v1126, 0
        %v1319 = vsel %vm1143, %v1127, 0
        %v1322 = vsel %vm1143, %v1128, 0
        %v1325 = vsel %vm1143, %v1129, 0
        %v1328 = vsel %vm1143, %v1130, 0
        %v1331 = vsel %vm1143, %v1131, 0
        %1333 = vmatprep.subr.mxu0 0.0
        %1334 = vmatpush1.msra.mxu0 %v1132
        %1335 = vmatprep.subr.mxu0 0.0
        %1336 = vmatpush1.msra.mxu0 %v1133
        %1337 = vmatprep.subr.mxu0 0.0
        %1338 = vmatpush1.msra.mxu0 %v1134
        %1339 = vmatprep.subr.mxu0 0.0
        %1340 = vmatpush1.msra.mxu0 %v1135
        %1341 = vmatprep.subr.mxu0 0.0
        %1342 = vmatpush1.msra.mxu0 0.0
        %1343 = vmatprep.subr.mxu0 0.0
        %1344 = vmatpush1.msra.mxu0 0.0
        %1345 = vmatprep.subr.mxu0 0.0
        %1346 = vmatpush1.msra.mxu0 0.0
        %1347 = vmatprep.subr.mxu0 0.0
        %1348 = vmatpush1.msra.mxu0 0.0
        %1349 = vmatprep.subr.mxu0 0.0
        %1350 = vmatpush1.msra.mxu0 0.0
        %1351 = vmatprep.subr.mxu0 0.0
        %1352 = vmatpush1.msra.mxu0 0.0
        %1353 = vmatprep.subr.mxu0 0.0
        %1354 = vmatpush1.msra.mxu0 0.0
        %1355 = vmatprep.subr.mxu0 0.0
        %1356 = vmatpush1.msra.mxu0 0.0
        %1357 = vmatprep.subr.mxu0 0.0
        %1358 = vmatpush1.msra.mxu0 0.0
        %1359 = vmatprep.subr.mxu0 0.0
        %1360 = vmatpush1.msra.mxu0 0.0
        %1361 = vmatprep.subr.mxu0 0.0
        %1362 = vmatpush1.msra.mxu0 0.0
        %1363 = vmatprep.subr.mxu0 0.0
        %1364 = vmatpush1.msra.mxu0 0.0
        %1365 = vmatprep.subr.mxu0 0.0
        %1366 = vmatpush1.msra.mxu0 0.0
        %1367 = vmatprep.subr.mxu0 0.0
        %1368 = vmatpush1.msra.mxu0 0.0
        %1369 = vmatprep.subr.mxu0 0.0
        %1370 = vmatpush1.msra.mxu0 0.0
        %1371 = vmatprep.subr.mxu0 0.0
        %1372 = vmatpush1.msra.mxu0 0.0
        %1373 = vmatprep.subr.mxu0 0.0
        %1374 = vmatpush1.msra.mxu0 0.0
        %1375 = vmatprep.subr.mxu0 0.0
        %1376 = vmatpush1.msra.mxu0 0.0
        %1377 = vmatprep.subr.mxu0 0.0
        %1378 = vmatpush1.msra.mxu0 0.0
        %1379 = vmatprep.subr.mxu0 0.0
        %1380 = vmatpush1.msra.mxu0 0.0
        %1381 = vmatprep.subr.mxu0 0.0
        %1382 = vmatpush1.msra.mxu0 0.0
        %1383 = vmatprep.subr.mxu0 0.0
        %1384 = vmatpush1.msra.mxu0 0.0
        %1385 = vmatprep.subr.mxu0 0.0
        %1386 = vmatpush1.msra.mxu0 0.0
        %1387 = vmatprep.subr.mxu0 0.0
        %1388 = vmatpush1.msra.mxu0 0.0
        %1389 = vmatprep.subr.mxu0 0.0
        %1390 = vmatpush1.msra.mxu0 0.0
        %1391 = vmatprep.subr.mxu0 0.0
        %1392 = vmatpush1.msra.mxu0 0.0
        %1393 = vmatprep.subr.mxu0 0.0
        %1394 = vmatpush1.msra.mxu0 0.0
        %1395 = vmatprep.subr.mxu0 0.0
        %1396 = vmatpush1.msra.mxu0 0.0
        %1397 = vmatprep.mubr.f32.mxu0 0.0
        %1398 = vmatmul.mubr.f32.gmra.mrb[0].mxu0 %v1145
        %v1399 = vpop.f32.mrb[0].mxu0
        %v1400 = vadd.f32 %v1141, %v1399
        %v1401 = vpop.f32.mrb[0].mxu0
        %1402 = vmatprep.mubr.f32.mxu0 0.0
        %1403 = vmatmul.mubr.f32.gmra.mrb[0].mxu0 %v1148
        %v1404 = vpop.f32.mrb[0].mxu0
        %v1405 = vadd.f32 %v1141, %v1404
        %v1406 = vpop.f32.mrb[0].mxu0
        %1407 = vmatprep.mubr.f32.mxu0 0.0
        %1408 = vmatmul.mubr.f32.gmra.mrb[0].mxu0 %v1151
        %v1409 = vpop.f32.mrb[0].mxu0
        %v1410 = vadd.f32 %v1141, %v1409
        %v1411 = vpop.f32.mrb[0].mxu0
        %1412 = vmatprep.mubr.f32.mxu0 0.0
        %1413 = vmatmul.mubr.f32.gmra.mrb[0].mxu0 %v1154
        %v1414 = vpop.f32.mrb[0].mxu0
        %v1415 = vadd.f32 %v1141, %v1414
        %v1416 = vpop.f32.mrb[0].mxu0
        %1417 = vmatprep.mubr.f32.mxu0 0.0
        %1418 = vmatmul.mubr.f32.gmra.mrb[0].mxu0 %v1157
        %v1419 = vpop.f32.mrb[0].mxu0
        %v1420 = vadd.f32 %v1141, %v1419
        %v1421 = vpop.f32.mrb[0].mxu0
        %1422 = vmatprep.mubr.f32.mxu0 0.0
        %1423 = vmatmul.mubr.f32.gmra.mrb[0].mxu0 %v1160
        %v1424 = vpop.f32.mrb[0].mxu0
        %v1425 = vadd.f32 %v1141, %v1424
        %v1426 = vpop.f32.mrb[0].mxu0
        %1427 = vmatprep.mubr.f32.mxu0 0.0
        %1428 = vmatmul.mubr.f32.gmra.mrb[0].mxu0 %v1163
        %v1429 = vpop.f32.mrb[0].mxu0
        %v1430 = vadd.f32 %v1141, %v1429
        %v1431 = vpop.f32.mrb[0].mxu0
        %1432 = vmatprep.mubr.f32.mxu0 0.0
        %1433 = vmatmul.mubr.f32.gmra.mrb[0].mxu0 %v1166
        %v1434 = vpop.f32.mrb[0].mxu0
        %v1435 = vadd.f32 %v1141, %v1434
        %v1436 = vpop.f32.mrb[0].mxu0
        %1437 = vmatprep.mubr.f32.mxu0 0.0
        %1438 = vmatmul.mubr.f32.gmra.mrb[0].mxu0 %v1169
        %v1439 = vpop.f32.mrb[0].mxu0
        %v1440 = vadd.f32 %v1141, %v1439
        %v1441 = vpop.f32.mrb[0].mxu0
        %1442 = vmatprep.mubr.f32.mxu0 0.0
        %1443 = vmatmul.mubr.f32.gmra.mrb[0].mxu0 %v1172
        %v1444 = vpop.f32.mrb[0].mxu0
        %v1445 = vadd.f32 %v1141, %v1444
        %v1446 = vpop.f32.mrb[0].mxu0
        %1447 = vmatprep.mubr.f32.mxu0 0.0
        %1448 = vmatmul.mubr.f32.gmra.mrb[0].mxu0 %v1175
        %v1449 = vpop.f32.mrb[0].mxu0
        %v1450 = vadd.f32 %v1141, %v1449
        %v1451 = vpop.f32.mrb[0].mxu0
        %1452 = vmatprep.mubr.f32.mxu0 0.0
        %1453 = vmatmul.mubr.f32.gmra.mrb[0].mxu0 %v1178
        %v1454 = vpop.f32.mrb[0].mxu0
        %v1455 = vadd.f32 %v1141, %v1454
        %v1456 = vpop.f32.mrb[0].mxu0
        %1457 = vmatprep.mubr.f32.mxu0 0.0
        %1458 = vmatmul.mubr.f32.gmra.mrb[0].mxu0 %v1181
        %v1459 = vpop.f32.mrb[0].mxu0
        %v1460 = vadd.f32 %v1141, %v1459
        %v1461 = vpop.f32.mrb[0].mxu0
        %1462 = vmatprep.mubr.f32.mxu0 0.0
        %1463 = vmatmul.mubr.f32.gmra.mrb[0].mxu0 %v1184
        %v1464 = vpop.f32.mrb[0].mxu0
        %v1465 = vadd.f32 %v1141, %v1464
        %v1466 = vpop.f32.mrb[0].mxu0
        %1467 = vmatprep.mubr.f32.mxu0 0.0
        %1468 = vmatmul.mubr.f32.gmra.mrb[0].mxu0 %v1187
        %v1469 = vpop.f32.mrb[0].mxu0
        %v1470 = vadd.f32 %v1141, %v1469
        %v1471 = vpop.f32.mrb[0].mxu0
        %1472 = vmatprep.mubr.f32.mxu0 0.0
        %1473 = vmatmul.mubr.f32.gmra.mrb[0].mxu0 %v1190
        %v1474 = vpop.f32.mrb[0].mxu0
        %v1475 = vadd.f32 %v1141, %v1474
        %v1476 = vpop.f32.mrb[0].mxu0
        %1477 = vmatprep.mubr.f32.mxu0 0.0
        %1478 = vmatmul.mubr.f32.gmra.mrb[0].mxu0 %v1193
        %v1479 = vpop.f32.mrb[0].mxu0
        %v1480 = vadd.f32 %v1141, %v1479
        %v1481 = vpop.f32.mrb[0].mxu0
        %1482 = vmatprep.mubr.f32.mxu0 0.0
        %1483 = vmatmul.mubr.f32.gmra.mrb[0].mxu0 %v1196
        %v1484 = vpop.f32.mrb[0].mxu0
        %v1485 = vadd.f32 %v1141, %v1484
        %v1486 = vpop.f32.mrb[0].mxu0
        %1487 = vmatprep.mubr.f32.mxu0 0.0
        %1488 = vmatmul.mubr.f32.gmra.mrb[0].mxu0 %v1199
        %v1489 = vpop.f32.mrb[0].mxu0
        %v1490 = vadd.f32 %v1141, %v1489
        %v1491 = vpop.f32.mrb[0].mxu0
        %1492 = vmatprep.mubr.f32.mxu0 0.0
        %1493 = vmatmul.mubr.f32.gmra.mrb[0].mxu0 %v1202
        %v1494 = vpop.f32.mrb[0].mxu0
        %v1495 = vadd.f32 %v1141, %v1494
        %v1496 = vpop.f32.mrb[0].mxu0
        %1497 = vmatprep.mubr.f32.mxu0 0.0
        %1498 = vmatmul.mubr.f32.gmra.mrb[0].mxu0 %v1205
        %v1499 = vpop.f32.mrb[0].mxu0
        %v1500 = vadd.f32 %v1141, %v1499
        %v1501 = vpop.f32.mrb[0].mxu0
        %1502 = vmatprep.mubr.f32.mxu0 0.0
        %1503 = vmatmul.mubr.f32.gmra.mrb[0].mxu0 %v1208
        %v1504 = vpop.f32.mrb[0].mxu0
        %v1505 = vadd.f32 %v1141, %v1504
        %v1506 = vpop.f32.mrb[0].mxu0
        %1507 = vmatprep.mubr.f32.mxu0 0.0
        %1508 = vmatmul.mubr.f32.gmra.mrb[0].mxu0 %v1211
        %v1509 = vpop.f32.mrb[0].mxu0
        %v1510 = vadd.f32 %v1141, %v1509
        %v1511 = vpop.f32.mrb[0].mxu0
        %1512 = vmatprep.mubr.f32.mxu0 0.0
        %1513 = vmatmul.mubr.f32.gmra.mrb[0].mxu0 %v1214
        %v1514 = vpop.f32.mrb[0].mxu0
        %v1515 = vadd.f32 %v1141, %v1514
        %v1516 = vpop.f32.mrb[0].mxu0
        %1517 = vmatprep.mubr.f32.mxu0 0.0
        %1518 = vmatmul.mubr.f32.gmra.mrb[0].mxu0 %v1217
        %v1519 = vpop.f32.mrb[0].mxu0
        %v1520 = vadd.f32 %v1141, %v1519
        %v1521 = vpop.f32.mrb[0].mxu0
        %1522 = vmatprep.mubr.f32.mxu0 0.0
        %1523 = vmatmul.mubr.f32.gmra.mrb[0].mxu0 %v1220
        %v1524 = vpop.f32.mrb[0].mxu0
        %v1525 = vadd.f32 %v1141, %v1524
        %v1526 = vpop.f32.mrb[0].mxu0
        %1527 = vmatprep.mubr.f32.mxu0 0.0
        %1528 = vmatmul.mubr.f32.gmra.mrb[0].mxu0 %v1223
        %v1529 = vpop.f32.mrb[0].mxu0
        %v1530 = vadd.f32 %v1141, %v1529
        %v1531 = vpop.f32.mrb[0].mxu0
        %1532 = vmatprep.mubr.f32.mxu0 0.0
        %1533 = vmatmul.mubr.f32.gmra.mrb[0].mxu0 %v1226
        %v1534 = vpop.f32.mrb[0].mxu0
        %v1535 = vadd.f32 %v1141, %v1534
        %v1536 = vpop.f32.mrb[0].mxu0
        %1537 = vmatprep.mubr.f32.mxu0 0.0
        %1538 = vmatmul.mubr.f32.gmra.mrb[0].mxu0 %v1229
        %v1539 = vpop.f32.mrb[0].mxu0
        %v1540 = vadd.f32 %v1141, %v1539
        %v1541 = vpop.f32.mrb[0].mxu0
        %1542 = vmatprep.mubr.f32.mxu0 0.0
        %1543 = vmatmul.mubr.f32.gmra.mrb[0].mxu0 %v1232
        %v1544 = vpop.f32.mrb[0].mxu0
        %v1545 = vadd.f32 %v1141, %v1544
        %v1546 = vpop.f32.mrb[0].mxu0
        %1547 = vmatprep.mubr.f32.mxu0 0.0
        %1548 = vmatmul.mubr.f32.gmra.mrb[0].mxu0 %v1235
        %v1549 = vpop.f32.mrb[0].mxu0
        %v1550 = vadd.f32 %v1141, %v1549
        %v1551 = vpop.f32.mrb[0].mxu0
        %1552 = vmatprep.mubr.f32.mxu0 0.0
        %1553 = vmatmul.mubr.f32.gmra.mrb[0].mxu0 %v1238
        %v1554 = vpop.f32.mrb[0].mxu0
        %v1555 = vadd.f32 %v1141, %v1554
        %v1556 = vpop.f32.mrb[0].mxu0
        %1557 = vmatprep.mubr.f32.mxu0 0.0
        %1558 = vmatmul.mubr.f32.gmra.mrb[0].mxu0 %v1241
        %v1559 = vpop.f32.mrb[0].mxu0
        %v1560 = vadd.f32 %v1141, %v1559
        %v1561 = vpop.f32.mrb[0].mxu0
        %1562 = vmatprep.mubr.f32.mxu0 0.0
        %1563 = vmatmul.mubr.f32.gmra.mrb[0].mxu0 %v1244
        %v1564 = vpop.f32.mrb[0].mxu0
        %v1565 = vadd.f32 %v1141, %v1564
        %v1566 = vpop.f32.mrb[0].mxu0
        %1567 = vmatprep.mubr.f32.mxu0 0.0
        %1568 = vmatmul.mubr.f32.gmra.mrb[0].mxu0 %v1247
        %v1569 = vpop.f32.mrb[0].mxu0
        %v1570 = vadd.f32 %v1141, %v1569
        %v1571 = vpop.f32.mrb[0].mxu0
        %1572 = vmatprep.mubr.f32.mxu0 0.0
        %1573 = vmatmul.mubr.f32.gmra.mrb[0].mxu0 %v1250
        %v1574 = vpop.f32.mrb[0].mxu0
        %v1575 = vadd.f32 %v1141, %v1574
        %v1576 = vpop.f32.mrb[0].mxu0
        %1577 = vmatprep.mubr.f32.mxu0 0.0
        %1578 = vmatmul.mubr.f32.gmra.mrb[0].mxu0 %v1253
        %v1579 = vpop.f32.mrb[0].mxu0
        %v1580 = vadd.f32 %v1141, %v1579
        %v1581 = vpop.f32.mrb[0].mxu0
        %1582 = vmatprep.mubr.f32.mxu0 0.0
        %1583 = vmatmul.mubr.f32.gmra.mrb[0].mxu0 %v1256
        %v1584 = vpop.f32.mrb[0].mxu0
        %v1585 = vadd.f32 %v1141, %v1584
        %v1586 = vpop.f32.mrb[0].mxu0
        %1587 = vmatprep.mubr.f32.mxu0 0.0
        %1588 = vmatmul.mubr.f32.gmra.mrb[0].mxu0 %v1259
        %v1589 = vpop.f32.mrb[0].mxu0
        %v1590 = vadd.f32 %v1141, %v1589
        %v1591 = vpop.f32.mrb[0].mxu0
        %1592 = vmatprep.mubr.f32.mxu0 0.0
        %1593 = vmatmul.mubr.f32.gmra.mrb[0].mxu0 %v1262
        %v1594 = vpop.f32.mrb[0].mxu0
        %v1595 = vadd.f32 %v1141, %v1594
        %v1596 = vpop.f32.mrb[0].mxu0
        %1597 = vmatprep.mubr.f32.mxu0 0.0
        %1598 = vmatmul.mubr.f32.gmra.mrb[0].mxu0 %v1265
        %v1599 = vpop.f32.mrb[0].mxu0
        %v1600 = vadd.f32 %v1141, %v1599
        %v1601 = vpop.f32.mrb[0].mxu0
        %1602 = vmatprep.mubr.f32.mxu0 0.0
        %1603 = vmatmul.mubr.f32.gmra.mrb[0].mxu0 %v1268
        %v1604 = vpop.f32.mrb[0].mxu0
        %v1605 = vadd.f32 %v1141, %v1604
        %v1606 = vpop.f32.mrb[0].mxu0
        %1607 = vmatprep.mubr.f32.mxu0 0.0
        %1608 = vmatmul.mubr.f32.gmra.mrb[0].mxu0 %v1271
        %v1609 = vpop.f32.mrb[0].mxu0
        %v1610 = vadd.f32 %v1141, %v1609
        %v1611 = vpop.f32.mrb[0].mxu0
        %1612 = vmatprep.mubr.f32.mxu0 0.0
        %1613 = vmatmul.mubr.f32.gmra.mrb[0].mxu0 %v1274
        %v1614 = vpop.f32.mrb[0].mxu0
        %v1615 = vadd.f32 %v1141, %v1614
        %v1616 = vpop.f32.mrb[0].mxu0
        %1617 = vmatprep.mubr.f32.mxu0 0.0
        %1618 = vmatmul.mubr.f32.gmra.mrb[0].mxu0 %v1277
        %v1619 = vpop.f32.mrb[0].mxu0
        %v1620 = vadd.f32 %v1141, %v1619
        %v1621 = vpop.f32.mrb[0].mxu0
        %1622 = vmatprep.mubr.f32.mxu0 0.0
        %1623 = vmatmul.mubr.f32.gmra.mrb[0].mxu0 %v1280
        %v1624 = vpop.f32.mrb[0].mxu0
        %v1625 = vadd.f32 %v1141, %v1624
        %v1626 = vpop.f32.mrb[0].mxu0
        %1627 = vmatprep.mubr.f32.mxu0 0.0
        %1628 = vmatmul.mubr.f32.gmra.mrb[0].mxu0 %v1283
        %v1629 = vpop.f32.mrb[0].mxu0
        %v1630 = vadd.f32 %v1141, %v1629
        %v1631 = vpop.f32.mrb[0].mxu0
        %1632 = vmatprep.mubr.f32.mxu0 0.0
        %1633 = vmatmul.mubr.f32.gmra.mrb[0].mxu0 %v1286
        %v1634 = vpop.f32.mrb[0].mxu0
        %v1635 = vadd.f32 %v1141, %v1634
        %v1636 = vpop.f32.mrb[0].mxu0
        %1637 = vmatprep.mubr.f32.mxu0 0.0
        %1638 = vmatmul.mubr.f32.gmra.mrb[0].mxu0 %v1289
        %v1639 = vpop.f32.mrb[0].mxu0
        %v1640 = vadd.f32 %v1141, %v1639
        %v1641 = vpop.f32.mrb[0].mxu0
        %1642 = vmatprep.mubr.f32.mxu0 0.0
        %1643 = vmatmul.mubr.f32.gmra.mrb[0].mxu0 %v1292
        %v1644 = vpop.f32.mrb[0].mxu0
        %v1645 = vadd.f32 %v1141, %v1644
        %v1646 = vpop.f32.mrb[0].mxu0
        %1647 = vmatprep.mubr.f32.mxu0 0.0
        %1648 = vmatmul.mubr.f32.gmra.mrb[0].mxu0 %v1295
        %v1649 = vpop.f32.mrb[0].mxu0
        %v1650 = vadd.f32 %v1141, %v1649
        %v1651 = vpop.f32.mrb[0].mxu0
        %1652 = vmatprep.mubr.f32.mxu0 0.0
        %1653 = vmatmul.mubr.f32.gmra.mrb[0].mxu0 %v1298
        %v1654 = vpop.f32.mrb[0].mxu0
        %v1655 = vadd.f32 %v1141, %v1654
        %v1656 = vpop.f32.mrb[0].mxu0
        %1657 = vmatprep.mubr.f32.mxu0 0.0
        %1658 = vmatmul.mubr.f32.gmra.mrb[0].mxu0 %v1301
        %v1659 = vpop.f32.mrb[0].mxu0
        %v1660 = vadd.f32 %v1141, %v1659
        %v1661 = vpop.f32.mrb[0].mxu0
        %1662 = vmatprep.mubr.f32.mxu0 0.0
        %1663 = vmatmul.mubr.f32.gmra.mrb[0].mxu0 %v1304
        %v1664 = vpop.f32.mrb[0].mxu0
        %v1665 = vadd.f32 %v1141, %v1664
        %v1666 = vpop.f32.mrb[0].mxu0
        %1667 = vmatprep.mubr.f32.mxu0 0.0
        %1668 = vmatmul.mubr.f32.gmra.mrb[0].mxu0 %v1307
        %v1669 = vpop.f32.mrb[0].mxu0
        %v1670 = vadd.f32 %v1141, %v1669
        %v1671 = vpop.f32.mrb[0].mxu0
        %1672 = vmatprep.mubr.f32.mxu0 0.0
        %1673 = vmatmul.mubr.f32.gmra.mrb[0].mxu0 %v1310
        %v1674 = vpop.f32.mrb[0].mxu0
        %v1675 = vadd.f32 %v1141, %v1674
        %v1676 = vpop.f32.mrb[0].mxu0
        %1677 = vmatprep.mubr.f32.mxu0 0.0
        %1678 = vmatmul.mubr.f32.gmra.mrb[0].mxu0 %v1313
        %v1679 = vpop.f32.mrb[0].mxu0
        %v1680 = vadd.f32 %v1141, %v1679
        %v1681 = vpop.f32.mrb[0].mxu0
        %1682 = vmatprep.mubr.f32.mxu0 0.0
        %1683 = vmatmul.mubr.f32.gmra.mrb[0].mxu0 %v1316
        %v1684 = vpop.f32.mrb[0].mxu0
        %v1685 = vadd.f32 %v1141, %v1684
        %v1686 = vpop.f32.mrb[0].mxu0
        %1687 = vmatprep.mubr.f32.mxu0 0.0
        %1688 = vmatmul.mubr.f32.gmra.mrb[0].mxu0 %v1319
        %v1689 = vpop.f32.mrb[0].mxu0
        %v1690 = vadd.f32 %v1141, %v1689
        %v1691 = vpop.f32.mrb[0].mxu0
        %1692 = vmatprep.mubr.f32.mxu0 0.0
        %1693 = vmatmul.mubr.f32.gmra.mrb[0].mxu0 %v1322
        %v1694 = vpop.f32.mrb[0].mxu0
        %v1695 = vadd.f32 %v1141, %v1694
        %v1696 = vpop.f32.mrb[0].mxu0
        %1697 = vmatprep.mubr.f32.mxu0 0.0
        %1698 = vmatmul.mubr.f32.gmra.mrb[0].mxu0 %v1325
        %v1699 = vpop.f32.mrb[0].mxu0
        %v1700 = vadd.f32 %v1141, %v1699
        %v1701 = vpop.f32.mrb[0].mxu0
        %1702 = vmatprep.mubr.f32.mxu0 0.0
        %1703 = vmatmul.mubr.f32.gmra.mrb[0].mxu0 %v1328
        %v1704 = vpop.f32.mrb[0].mxu0
        %v1705 = vadd.f32 %v1141, %v1704
        %v1706 = vpop.f32.mrb[0].mxu0
        %1707 = vmatprep.mubr.f32.mxu0 0.0
        %1708 = vmatmul.mubr.f32.gmra.mrb[0].mxu0 %v1331
        %v1709 = vpop.f32.mrb[0].mxu0
        %v1710 = vadd.f32 %v1141, %v1709
        %v1711 = vpop.f32.mrb[0].mxu0
        %1712 = vdwg.mxu0
        %v1713 = vtanh.pop %v1400
        %v1714 = vtanh.pop %v1405
        %v1715 = vtanh.pop %v1410
        %v1716 = vtanh.pop %v1415
        %v1717 = vtanh.pop %v1420
        %v1718 = vtanh.pop %v1425
        %v1719 = vtanh.pop %v1430
        %v1720 = vtanh.pop %v1435
        %v1721 = vtanh.pop %v1440
        %v1722 = vtanh.pop %v1445
        %v1723 = vtanh.pop %v1450
        %v1724 = vtanh.pop %v1455
        %v1725 = vtanh.pop %v1460
        %v1726 = vtanh.pop %v1465
        %v1727 = vtanh.pop %v1470
        %v1728 = vtanh.pop %v1475
        %v1729 = vtanh.pop %v1480
        %v1730 = vtanh.pop %v1485
        %v1731 = vtanh.pop %v1490
        %v1732 = vtanh.pop %v1495
        %v1733 = vtanh.pop %v1500
        %v1734 = vtanh.pop %v1505
        %v1735 = vtanh.pop %v1510
        %v1736 = vtanh.pop %v1515
        %v1737 = vtanh.pop %v1520
        %v1738 = vtanh.pop %v1525
        %v1739 = vtanh.pop %v1530
        %v1740 = vtanh.pop %v1535
        %v1741 = vtanh.pop %v1540
        %v1742 = vtanh.pop %v1545
        %v1743 = vtanh.pop %v1550
        %v1744 = vtanh.pop %v1555
        %v1745 = vtanh.pop %v1560
        %v1746 = vtanh.pop %v1565
        %v1747 = vtanh.pop %v1570
        %v1748 = vtanh.pop %v1575
        %v1749 = vtanh.pop %v1580
        %v1750 = vtanh.pop %v1585
        %v1751 = vtanh.pop %v1590
        %v1752 = vtanh.pop %v1595
        %v1753 = vtanh.pop %v1600
        %v1754 = vtanh.pop %v1605
        %v1755 = vtanh.pop %v1610
        %v1756 = vtanh.pop %v1615
        %v1757 = vtanh.pop %v1620
        %v1758 = vtanh.pop %v1625
        %v1759 = vtanh.pop %v1630
        %v1760 = vtanh.pop %v1635
        %v1761 = vtanh.pop %v1640
        %v1762 = vtanh.pop %v1645
        %v1763 = vtanh.pop %v1650
        %v1764 = vtanh.pop %v1655
        %v1765 = vtanh.pop %v1660
        %v1766 = vtanh.pop %v1665
        %v1767 = vtanh.pop %v1670
        %v1768 = vtanh.pop %v1675
        %v1769 = vtanh.pop %v1680
        %v1770 = vtanh.pop %v1685
        %v1771 = vtanh.pop %v1690
        %v1772 = vtanh.pop %v1695
        %v1773 = vtanh.pop %v1700
        %v1774 = vtanh.pop %v1705
        %v1775 = vtanh.pop %v1710
        %v1776 = vld [vmem:[%s6] sm:$0xff]
        %v1777 = vld [vmem:[%s6 + $0x8] sm:$0xff]
        %v1778 = vld [vmem:[%s6 + $0x10] sm:$0xff]
        %v1779 = vld [vmem:[%s6 + $0x18] sm:$0xff]
        %v1780 = vld [vmem:[%s7] sm:$0x1]
        %v1782 = vlaneseq
        %v1783 = vshrl.u32 %v1782, 7
        %v1784 = vsub.s32 0, %v1783
        %v1785 = vrot.slane %v1780, %v1784
        %v1788 = vsel %vm1143, %v1713, 0
        %v1791 = vsel %vm1143, %v1714, 0
        %v1794 = vsel %vm1143, %v1715, 0
        %v1797 = vsel %vm1143, %v1716, 0
        %v1800 = vsel %vm1143, %v1717, 0
        %v1803 = vsel %vm1143, %v1718, 0
        %v1806 = vsel %vm1143, %v1719, 0
        %v1809 = vsel %vm1143, %v1720, 0
        %v1812 = vsel %vm1143, %v1721, 0
        %v1815 = vsel %vm1143, %v1722, 0
        %v1818 = vsel %vm1143, %v1723, 0
        %v1821 = vsel %vm1143, %v1724, 0
        %v1824 = vsel %vm1143, %v1725, 0
        %v1827 = vsel %vm1143, %v1726, 0
        %v1830 = vsel %vm1143, %v1727, 0
        %v1833 = vsel %vm1143, %v1728, 0
        %v1836 = vsel %vm1143, %v1729, 0
        %v1839 = vsel %vm1143, %v1730, 0
        %v1842 = vsel %vm1143, %v1731, 0
        %v1845 = vsel %vm1143, %v1732, 0
        %v1848 = vsel %vm1143, %v1733, 0
        %v1851 = vsel %vm1143, %v1734, 0
        %v1854 = vsel %vm1143, %v1735, 0
        %v1857 = vsel %vm1143, %v1736, 0
        %v1860 = vsel %vm1143, %v1737, 0
        %v1863 = vsel %vm1143, %v1738, 0
        %v1866 = vsel %vm1143, %v1739, 0
        %v1869 = vsel %vm1143, %v1740, 0
        %v1872 = vsel %vm1143, %v1741, 0
        %v1875 = vsel %vm1143, %v1742, 0
        %v1878 = vsel %vm1143, %v1743, 0
        %v1881 = vsel %vm1143, %v1744, 0
        %v1884 = vsel %vm1143, %v1745, 0
        %v1887 = vsel %vm1143, %v1746, 0
        %v1890 = vsel %vm1143, %v1747, 0
        %v1893 = vsel %vm1143, %v1748, 0
        %v1896 = vsel %vm1143, %v1749, 0
        %v1899 = vsel %vm1143, %v1750, 0
        %v1902 = vsel %vm1143, %v1751, 0
        %v1905 = vsel %vm1143, %v1752, 0
        %v1908 = vsel %vm1143, %v1753, 0
        %v1911 = vsel %vm1143, %v1754, 0
        %v1914 = vsel %vm1143, %v1755, 0
        %v1917 = vsel %vm1143, %v1756, 0
        %v1920 = vsel %vm1143, %v1757, 0
        %v1923 = vsel %vm1143, %v1758, 0
        %v1926 = vsel %vm1143, %v1759, 0
        %v1929 = vsel %vm1143, %v1760, 0
        %v1932 = vsel %vm1143, %v1761, 0
        %v1935 = vsel %vm1143, %v1762, 0
        %v1938 = vsel %vm1143, %v1763, 0
        %v1941 = vsel %vm1143, %v1764, 0
        %v1944 = vsel %vm1143, %v1765, 0
        %v1947 = vsel %vm1143, %v1766, 0
        %v1950 = vsel %vm1143, %v1767, 0
        %v1953 = vsel %vm1143, %v1768, 0
        %v1956 = vsel %vm1143, %v1769, 0
        %v1959 = vsel %vm1143, %v1770, 0
        %v1962 = vsel %vm1143, %v1771, 0
        %v1965 = vsel %vm1143, %v1772, 0
        %v1968 = vsel %vm1143, %v1773, 0
        %v1971 = vsel %vm1143, %v1774, 0
        %v1974 = vsel %vm1143, %v1775, 0
        %1976 = vmatprep.subr.mxu0 0.0
        %1977 = vmatpush1.msra.mxu0 %v1776
        %1978 = vmatprep.subr.mxu0 0.0
        %1979 = vmatpush1.msra.mxu0 %v1777
        %1980 = vmatprep.subr.mxu0 0.0
        %1981 = vmatpush1.msra.mxu0 %v1778
        %1982 = vmatprep.subr.mxu0 0.0
        %1983 = vmatpush1.msra.mxu0 %v1779
        %1984 = vmatprep.subr.mxu0 0.0
        %1985 = vmatpush1.msra.mxu0 0.0
        %1986 = vmatprep.subr.mxu0 0.0
        %1987 = vmatpush1.msra.mxu0 0.0
        %1988 = vmatprep.subr.mxu0 0.0
        %1989 = vmatpush1.msra.mxu0 0.0
        %1990 = vmatprep.subr.mxu0 0.0
        %1991 = vmatpush1.msra.mxu0 0.0
        %1992 = vmatprep.subr.mxu0 0.0
        %1993 = vmatpush1.msra.mxu0 0.0
        %1994 = vmatprep.subr.mxu0 0.0
        %1995 = vmatpush1.msra.mxu0 0.0
        %1996 = vmatprep.subr.mxu0 0.0
        %1997 = vmatpush1.msra.mxu0 0.0
        %1998 = vmatprep.subr.mxu0 0.0
        %1999 = vmatpush1.msra.mxu0 0.0
        %2000 = vmatprep.subr.mxu0 0.0
        %2001 = vmatpush1.msra.mxu0 0.0
        %2002 = vmatprep.subr.mxu0 0.0
        %2003 = vmatpush1.msra.mxu0 0.0
        %2004 = vmatprep.subr.mxu0 0.0
        %2005 = vmatpush1.msra.mxu0 0.0
        %2006 = vmatprep.subr.mxu0 0.0
        %2007 = vmatpush1.msra.mxu0 0.0
        %2008 = vmatprep.subr.mxu0 0.0
        %2009 = vmatpush1.msra.mxu0 0.0
        %2010 = vmatprep.subr.mxu0 0.0
        %2011 = vmatpush1.msra.mxu0 0.0
        %2012 = vmatprep.subr.mxu0 0.0
        %2013 = vmatpush1.msra.mxu0 0.0
        %2014 = vmatprep.subr.mxu0 0.0
        %2015 = vmatpush1.msra.mxu0 0.0
        %2016 = vmatprep.subr.mxu0 0.0
        %2017 = vmatpush1.msra.mxu0 0.0
        %2018 = vmatprep.subr.mxu0 0.0
        %2019 = vmatpush1.msra.mxu0 0.0
        %2020 = vmatprep.subr.mxu0 0.0
        %2021 = vmatpush1.msra.mxu0 0.0
        %2022 = vmatprep.subr.mxu0 0.0
        %2023 = vmatpush1.msra.mxu0 0.0
        %2024 = vmatprep.subr.mxu0 0.0
        %2025 = vmatpush1.msra.mxu0 0.0
        %2026 = vmatprep.subr.mxu0 0.0
        %2027 = vmatpush1.msra.mxu0 0.0
        %2028 = vmatprep.subr.mxu0 0.0
        %2029 = vmatpush1.msra.mxu0 0.0
        %2030 = vmatprep.subr.mxu0 0.0
        %2031 = vmatpush1.msra.mxu0 0.0
        %2032 = vmatprep.subr.mxu0 0.0
        %2033 = vmatpush1.msra.mxu0 0.0
        %2034 = vmatprep.subr.mxu0 0.0
        %2035 = vmatpush1.msra.mxu0 0.0
        %2036 = vmatprep.subr.mxu0 0.0
        %2037 = vmatpush1.msra.mxu0 0.0
        %2038 = vmatprep.subr.mxu0 0.0
        %2039 = vmatpush1.msra.mxu0 0.0
        %2040 = vmatprep.mubr.f32.mxu0 0.0
        %2041 = vmatmul.mubr.f32.gmra.mrb[0].mxu0 %v1788
        %v2042 = vpop.f32.mrb[0].mxu0
        %v2043 = vadd.f32 %v1785, %v2042
        %v2044 = vpop.f32.mrb[0].mxu0
        %2045 = vmatprep.mubr.f32.mxu0 0.0
        %2046 = vmatmul.mubr.f32.gmra.mrb[0].mxu0 %v1791
        %v2047 = vpop.f32.mrb[0].mxu0
        %v2048 = vadd.f32 %v1785, %v2047
        %v2049 = vpop.f32.mrb[0].mxu0
        %2050 = vmatprep.mubr.f32.mxu0 0.0
        %2051 = vmatmul.mubr.f32.gmra.mrb[0].mxu0 %v1794
        %v2052 = vpop.f32.mrb[0].mxu0
        %v2053 = vadd.f32 %v1785, %v2052
        %v2054 = vpop.f32.mrb[0].mxu0
        %2055 = vmatprep.mubr.f32.mxu0 0.0
        %2056 = vmatmul.mubr.f32.gmra.mrb[0].mxu0 %v1797
        %v2057 = vpop.f32.mrb[0].mxu0
        %v2058 = vadd.f32 %v1785, %v2057
        %v2059 = vpop.f32.mrb[0].mxu0
        %2060 = vmatprep.mubr.f32.mxu0 0.0
        %2061 = vmatmul.mubr.f32.gmra.mrb[0].mxu0 %v1800
        %v2062 = vpop.f32.mrb[0].mxu0
        %v2063 = vadd.f32 %v1785, %v2062
        %v2064 = vpop.f32.mrb[0].mxu0
        %2065 = vmatprep.mubr.f32.mxu0 0.0
        %2066 = vmatmul.mubr.f32.gmra.mrb[0].mxu0 %v1803
        %v2067 = vpop.f32.mrb[0].mxu0
        %v2068 = vadd.f32 %v1785, %v2067
        %v2069 = vpop.f32.mrb[0].mxu0
        %2070 = vmatprep.mubr.f32.mxu0 0.0
        %2071 = vmatmul.mubr.f32.gmra.mrb[0].mxu0 %v1806
        %v2072 = vpop.f32.mrb[0].mxu0
        %v2073 = vadd.f32 %v1785, %v2072
        %v2074 = vpop.f32.mrb[0].mxu0
        %2075 = vmatprep.mubr.f32.mxu0 0.0
        %2076 = vmatmul.mubr.f32.gmra.mrb[0].mxu0 %v1809
        %v2077 = vpop.f32.mrb[0].mxu0
        %v2078 = vadd.f32 %v1785, %v2077
        %v2079 = vpop.f32.mrb[0].mxu0
        %2080 = vmatprep.mubr.f32.mxu0 0.0
        %2081 = vmatmul.mubr.f32.gmra.mrb[0].mxu0 %v1812
        %v2082 = vpop.f32.mrb[0].mxu0
        %v2083 = vadd.f32 %v1785, %v2082
        %v2084 = vpop.f32.mrb[0].mxu0
        %2085 = vmatprep.mubr.f32.mxu0 0.0
        %2086 = vmatmul.mubr.f32.gmra.mrb[0].mxu0 %v1815
        %v2087 = vpop.f32.mrb[0].mxu0
        %v2088 = vadd.f32 %v1785, %v2087
        %v2089 = vpop.f32.mrb[0].mxu0
        %2090 = vmatprep.mubr.f32.mxu0 0.0
        %2091 = vmatmul.mubr.f32.gmra.mrb[0].mxu0 %v1818
        %v2092 = vpop.f32.mrb[0].mxu0
        %v2093 = vadd.f32 %v1785, %v2092
        %v2094 = vpop.f32.mrb[0].mxu0
        %2095 = vmatprep.mubr.f32.mxu0 0.0
        %2096 = vmatmul.mubr.f32.gmra.mrb[0].mxu0 %v1821
        %v2097 = vpop.f32.mrb[0].mxu0
        %v2098 = vadd.f32 %v1785, %v2097
        %v2099 = vpop.f32.mrb[0].mxu0
        %2100 = vmatprep.mubr.f32.mxu0 0.0
        %2101 = vmatmul.mubr.f32.gmra.mrb[0].mxu0 %v1824
        %v2102 = vpop.f32.mrb[0].mxu0
        %v2103 = vadd.f32 %v1785, %v2102
        %v2104 = vpop.f32.mrb[0].mxu0
        %2105 = vmatprep.mubr.f32.mxu0 0.0
        %2106 = vmatmul.mubr.f32.gmra.mrb[0].mxu0 %v1827
        %v2107 = vpop.f32.mrb[0].mxu0
        %v2108 = vadd.f32 %v1785, %v2107
        %v2109 = vpop.f32.mrb[0].mxu0
        %2110 = vmatprep.mubr.f32.mxu0 0.0
        %2111 = vmatmul.mubr.f32.gmra.mrb[0].mxu0 %v1830
        %v2112 = vpop.f32.mrb[0].mxu0
        %v2113 = vadd.f32 %v1785, %v2112
        %v2114 = vpop.f32.mrb[0].mxu0
        %2115 = vmatprep.mubr.f32.mxu0 0.0
        %2116 = vmatmul.mubr.f32.gmra.mrb[0].mxu0 %v1833
        %v2117 = vpop.f32.mrb[0].mxu0
        %v2118 = vadd.f32 %v1785, %v2117
        %v2119 = vpop.f32.mrb[0].mxu0
        %2120 = vmatprep.mubr.f32.mxu0 0.0
        %2121 = vmatmul.mubr.f32.gmra.mrb[0].mxu0 %v1836
        %v2122 = vpop.f32.mrb[0].mxu0
        %v2123 = vadd.f32 %v1785, %v2122
        %v2124 = vpop.f32.mrb[0].mxu0
        %2125 = vmatprep.mubr.f32.mxu0 0.0
        %2126 = vmatmul.mubr.f32.gmra.mrb[0].mxu0 %v1839
        %v2127 = vpop.f32.mrb[0].mxu0
        %v2128 = vadd.f32 %v1785, %v2127
        %v2129 = vpop.f32.mrb[0].mxu0
        %2130 = vmatprep.mubr.f32.mxu0 0.0
        %2131 = vmatmul.mubr.f32.gmra.mrb[0].mxu0 %v1842
        %v2132 = vpop.f32.mrb[0].mxu0
        %v2133 = vadd.f32 %v1785, %v2132
        %v2134 = vpop.f32.mrb[0].mxu0
        %2135 = vmatprep.mubr.f32.mxu0 0.0
        %2136 = vmatmul.mubr.f32.gmra.mrb[0].mxu0 %v1845
        %v2137 = vpop.f32.mrb[0].mxu0
        %v2138 = vadd.f32 %v1785, %v2137
        %v2139 = vpop.f32.mrb[0].mxu0
        %2140 = vmatprep.mubr.f32.mxu0 0.0
        %2141 = vmatmul.mubr.f32.gmra.mrb[0].mxu0 %v1848
        %v2142 = vpop.f32.mrb[0].mxu0
        %v2143 = vadd.f32 %v1785, %v2142
        %v2144 = vpop.f32.mrb[0].mxu0
        %2145 = vmatprep.mubr.f32.mxu0 0.0
        %2146 = vmatmul.mubr.f32.gmra.mrb[0].mxu0 %v1851
        %v2147 = vpop.f32.mrb[0].mxu0
        %v2148 = vadd.f32 %v1785, %v2147
        %v2149 = vpop.f32.mrb[0].mxu0
        %2150 = vmatprep.mubr.f32.mxu0 0.0
        %2151 = vmatmul.mubr.f32.gmra.mrb[0].mxu0 %v1854
        %v2152 = vpop.f32.mrb[0].mxu0
        %v2153 = vadd.f32 %v1785, %v2152
        %v2154 = vpop.f32.mrb[0].mxu0
        %2155 = vmatprep.mubr.f32.mxu0 0.0
        %2156 = vmatmul.mubr.f32.gmra.mrb[0].mxu0 %v1857
        %v2157 = vpop.f32.mrb[0].mxu0
        %v2158 = vadd.f32 %v1785, %v2157
        %v2159 = vpop.f32.mrb[0].mxu0
        %2160 = vmatprep.mubr.f32.mxu0 0.0
        %2161 = vmatmul.mubr.f32.gmra.mrb[0].mxu0 %v1860
        %v2162 = vpop.f32.mrb[0].mxu0
        %v2163 = vadd.f32 %v1785, %v2162
        %v2164 = vpop.f32.mrb[0].mxu0
        %2165 = vmatprep.mubr.f32.mxu0 0.0
        %2166 = vmatmul.mubr.f32.gmra.mrb[0].mxu0 %v1863
        %v2167 = vpop.f32.mrb[0].mxu0
        %v2168 = vadd.f32 %v1785, %v2167
        %v2169 = vpop.f32.mrb[0].mxu0
        %2170 = vmatprep.mubr.f32.mxu0 0.0
        %2171 = vmatmul.mubr.f32.gmra.mrb[0].mxu0 %v1866
        %v2172 = vpop.f32.mrb[0].mxu0
        %v2173 = vadd.f32 %v1785, %v2172
        %v2174 = vpop.f32.mrb[0].mxu0
        %2175 = vmatprep.mubr.f32.mxu0 0.0
        %2176 = vmatmul.mubr.f32.gmra.mrb[0].mxu0 %v1869
        %v2177 = vpop.f32.mrb[0].mxu0
        %v2178 = vadd.f32 %v1785, %v2177
        %v2179 = vpop.f32.mrb[0].mxu0
        %2180 = vmatprep.mubr.f32.mxu0 0.0
        %2181 = vmatmul.mubr.f32.gmra.mrb[0].mxu0 %v1872
        %v2182 = vpop.f32.mrb[0].mxu0
        %v2183 = vadd.f32 %v1785, %v2182
        %v2184 = vpop.f32.mrb[0].mxu0
        %2185 = vmatprep.mubr.f32.mxu0 0.0
        %2186 = vmatmul.mubr.f32.gmra.mrb[0].mxu0 %v1875
        %v2187 = vpop.f32.mrb[0].mxu0
        %v2188 = vadd.f32 %v1785, %v2187
        %v2189 = vpop.f32.mrb[0].mxu0
        %2190 = vmatprep.mubr.f32.mxu0 0.0
        %2191 = vmatmul.mubr.f32.gmra.mrb[0].mxu0 %v1878
        %v2192 = vpop.f32.mrb[0].mxu0
        %v2193 = vadd.f32 %v1785, %v2192
        %v2194 = vpop.f32.mrb[0].mxu0
        %2195 = vmatprep.mubr.f32.mxu0 0.0
        %2196 = vmatmul.mubr.f32.gmra.mrb[0].mxu0 %v1881
        %v2197 = vpop.f32.mrb[0].mxu0
        %v2198 = vadd.f32 %v1785, %v2197
        %v2199 = vpop.f32.mrb[0].mxu0
        %2200 = vmatprep.mubr.f32.mxu0 0.0
        %2201 = vmatmul.mubr.f32.gmra.mrb[0].mxu0 %v1884
        %v2202 = vpop.f32.mrb[0].mxu0
        %v2203 = vadd.f32 %v1785, %v2202
        %v2204 = vpop.f32.mrb[0].mxu0
        %2205 = vmatprep.mubr.f32.mxu0 0.0
        %2206 = vmatmul.mubr.f32.gmra.mrb[0].mxu0 %v1887
        %v2207 = vpop.f32.mrb[0].mxu0
        %v2208 = vadd.f32 %v1785, %v2207
        %v2209 = vpop.f32.mrb[0].mxu0
        %2210 = vmatprep.mubr.f32.mxu0 0.0
        %2211 = vmatmul.mubr.f32.gmra.mrb[0].mxu0 %v1890
        %v2212 = vpop.f32.mrb[0].mxu0
        %v2213 = vadd.f32 %v1785, %v2212
        %v2214 = vpop.f32.mrb[0].mxu0
        %2215 = vmatprep.mubr.f32.mxu0 0.0
        %2216 = vmatmul.mubr.f32.gmra.mrb[0].mxu0 %v1893
        %v2217 = vpop.f32.mrb[0].mxu0
        %v2218 = vadd.f32 %v1785, %v2217
        %v2219 = vpop.f32.mrb[0].mxu0
        %2220 = vmatprep.mubr.f32.mxu0 0.0
        %2221 = vmatmul.mubr.f32.gmra.mrb[0].mxu0 %v1896
        %v2222 = vpop.f32.mrb[0].mxu0
        %v2223 = vadd.f32 %v1785, %v2222
        %v2224 = vpop.f32.mrb[0].mxu0
        %2225 = vmatprep.mubr.f32.mxu0 0.0
        %2226 = vmatmul.mubr.f32.gmra.mrb[0].mxu0 %v1899
        %v2227 = vpop.f32.mrb[0].mxu0
        %v2228 = vadd.f32 %v1785, %v2227
        %v2229 = vpop.f32.mrb[0].mxu0
        %2230 = vmatprep.mubr.f32.mxu0 0.0
        %2231 = vmatmul.mubr.f32.gmra.mrb[0].mxu0 %v1902
        %v2232 = vpop.f32.mrb[0].mxu0
        %v2233 = vadd.f32 %v1785, %v2232
        %v2234 = vpop.f32.mrb[0].mxu0
        %2235 = vmatprep.mubr.f32.mxu0 0.0
        %2236 = vmatmul.mubr.f32.gmra.mrb[0].mxu0 %v1905
        %v2237 = vpop.f32.mrb[0].mxu0
        %v2238 = vadd.f32 %v1785, %v2237
        %v2239 = vpop.f32.mrb[0].mxu0
        %2240 = vmatprep.mubr.f32.mxu0 0.0
        %2241 = vmatmul.mubr.f32.gmra.mrb[0].mxu0 %v1908
        %v2242 = vpop.f32.mrb[0].mxu0
        %v2243 = vadd.f32 %v1785, %v2242
        %v2244 = vpop.f32.mrb[0].mxu0
        %2245 = vmatprep.mubr.f32.mxu0 0.0
        %2246 = vmatmul.mubr.f32.gmra.mrb[0].mxu0 %v1911
        %v2247 = vpop.f32.mrb[0].mxu0
        %v2248 = vadd.f32 %v1785, %v2247
        %v2249 = vpop.f32.mrb[0].mxu0
        %2250 = vmatprep.mubr.f32.mxu0 0.0
        %2251 = vmatmul.mubr.f32.gmra.mrb[0].mxu0 %v1914
        %v2252 = vpop.f32.mrb[0].mxu0
        %v2253 = vadd.f32 %v1785, %v2252
        %v2254 = vpop.f32.mrb[0].mxu0
        %2255 = vmatprep.mubr.f32.mxu0 0.0
        %2256 = vmatmul.mubr.f32.gmra.mrb[0].mxu0 %v1917
        %v2257 = vpop.f32.mrb[0].mxu0
        %v2258 = vadd.f32 %v1785, %v2257
        %v2259 = vpop.f32.mrb[0].mxu0
        %2260 = vmatprep.mubr.f32.mxu0 0.0
        %2261 = vmatmul.mubr.f32.gmra.mrb[0].mxu0 %v1920
        %v2262 = vpop.f32.mrb[0].mxu0
        %v2263 = vadd.f32 %v1785, %v2262
        %v2264 = vpop.f32.mrb[0].mxu0
        %2265 = vmatprep.mubr.f32.mxu0 0.0
        %2266 = vmatmul.mubr.f32.gmra.mrb[0].mxu0 %v1923
        %v2267 = vpop.f32.mrb[0].mxu0
        %v2268 = vadd.f32 %v1785, %v2267
        %v2269 = vpop.f32.mrb[0].mxu0
        %2270 = vmatprep.mubr.f32.mxu0 0.0
        %2271 = vmatmul.mubr.f32.gmra.mrb[0].mxu0 %v1926
        %v2272 = vpop.f32.mrb[0].mxu0
        %v2273 = vadd.f32 %v1785, %v2272
        %v2274 = vpop.f32.mrb[0].mxu0
        %2275 = vmatprep.mubr.f32.mxu0 0.0
        %2276 = vmatmul.mubr.f32.gmra.mrb[0].mxu0 %v1929
        %v2277 = vpop.f32.mrb[0].mxu0
        %v2278 = vadd.f32 %v1785, %v2277
        %v2279 = vpop.f32.mrb[0].mxu0
        %2280 = vmatprep.mubr.f32.mxu0 0.0
        %2281 = vmatmul.mubr.f32.gmra.mrb[0].mxu0 %v1932
        %v2282 = vpop.f32.mrb[0].mxu0
        %v2283 = vadd.f32 %v1785, %v2282
        %v2284 = vpop.f32.mrb[0].mxu0
        %2285 = vmatprep.mubr.f32.mxu0 0.0
        %2286 = vmatmul.mubr.f32.gmra.mrb[0].mxu0 %v1935
        %v2287 = vpop.f32.mrb[0].mxu0
        %v2288 = vadd.f32 %v1785, %v2287
        %v2289 = vpop.f32.mrb[0].mxu0
        %2290 = vmatprep.mubr.f32.mxu0 0.0
        %2291 = vmatmul.mubr.f32.gmra.mrb[0].mxu0 %v1938
        %v2292 = vpop.f32.mrb[0].mxu0
        %v2293 = vadd.f32 %v1785, %v2292
        %v2294 = vpop.f32.mrb[0].mxu0
        %2295 = vmatprep.mubr.f32.mxu0 0.0
        %2296 = vmatmul.mubr.f32.gmra.mrb[0].mxu0 %v1941
        %v2297 = vpop.f32.mrb[0].mxu0
        %v2298 = vadd.f32 %v1785, %v2297
        %v2299 = vpop.f32.mrb[0].mxu0
        %2300 = vmatprep.mubr.f32.mxu0 0.0
        %2301 = vmatmul.mubr.f32.gmra.mrb[0].mxu0 %v1944
        %v2302 = vpop.f32.mrb[0].mxu0
        %v2303 = vadd.f32 %v1785, %v2302
        %v2304 = vpop.f32.mrb[0].mxu0
        %2305 = vmatprep.mubr.f32.mxu0 0.0
        %2306 = vmatmul.mubr.f32.gmra.mrb[0].mxu0 %v1947
        %v2307 = vpop.f32.mrb[0].mxu0
        %v2308 = vadd.f32 %v1785, %v2307
        %v2309 = vpop.f32.mrb[0].mxu0
        %2310 = vmatprep.mubr.f32.mxu0 0.0
        %2311 = vmatmul.mubr.f32.gmra.mrb[0].mxu0 %v1950
        %v2312 = vpop.f32.mrb[0].mxu0
        %v2313 = vadd.f32 %v1785, %v2312
        %v2314 = vpop.f32.mrb[0].mxu0
        %2315 = vmatprep.mubr.f32.mxu0 0.0
        %2316 = vmatmul.mubr.f32.gmra.mrb[0].mxu0 %v1953
        %v2317 = vpop.f32.mrb[0].mxu0
        %v2318 = vadd.f32 %v1785, %v2317
        %v2319 = vpop.f32.mrb[0].mxu0
        %2320 = vmatprep.mubr.f32.mxu0 0.0
        %2321 = vmatmul.mubr.f32.gmra.mrb[0].mxu0 %v1956
        %v2322 = vpop.f32.mrb[0].mxu0
        %v2323 = vadd.f32 %v1785, %v2322
        %v2324 = vpop.f32.mrb[0].mxu0
        %2325 = vmatprep.mubr.f32.mxu0 0.0
        %2326 = vmatmul.mubr.f32.gmra.mrb[0].mxu0 %v1959
        %v2327 = vpop.f32.mrb[0].mxu0
        %v2328 = vadd.f32 %v1785, %v2327
        %v2329 = vpop.f32.mrb[0].mxu0
        %2330 = vmatprep.mubr.f32.mxu0 0.0
        %2331 = vmatmul.mubr.f32.gmra.mrb[0].mxu0 %v1962
        %v2332 = vpop.f32.mrb[0].mxu0
        %v2333 = vadd.f32 %v1785, %v2332
        %v2334 = vpop.f32.mrb[0].mxu0
        %2335 = vmatprep.mubr.f32.mxu0 0.0
        %2336 = vmatmul.mubr.f32.gmra.mrb[0].mxu0 %v1965
        %v2337 = vpop.f32.mrb[0].mxu0
        %v2338 = vadd.f32 %v1785, %v2337
        %v2339 = vpop.f32.mrb[0].mxu0
        %2340 = vmatprep.mubr.f32.mxu0 0.0
        %2341 = vmatmul.mubr.f32.gmra.mrb[0].mxu0 %v1968
        %v2342 = vpop.f32.mrb[0].mxu0
        %v2343 = vadd.f32 %v1785, %v2342
        %v2344 = vpop.f32.mrb[0].mxu0
        %2345 = vmatprep.mubr.f32.mxu0 0.0
        %2346 = vmatmul.mubr.f32.gmra.mrb[0].mxu0 %v1971
        %v2347 = vpop.f32.mrb[0].mxu0
        %v2348 = vadd.f32 %v1785, %v2347
        %v2349 = vpop.f32.mrb[0].mxu0
        %2350 = vmatprep.mubr.f32.mxu0 0.0
        %2351 = vmatmul.mubr.f32.gmra.mrb[0].mxu0 %v1974
        %v2352 = vpop.f32.mrb[0].mxu0
        %v2353 = vadd.f32 %v1785, %v2352
        %v2354 = vpop.f32.mrb[0].mxu0
        %2355 = vdwg.mxu0
        %v2356 = vld [vmem:[%s416] sm:$0xff]
        %v2357 = vld [vmem:[%s416 + $0x8] sm:$0xff]
        %v2358 = vld [vmem:[%s416 + $0x10] sm:$0xff]
        %v2359 = vld [vmem:[%s416 + $0x18] sm:$0xff]
        %v2360 = vld [vmem:[%s416 + $0x20] sm:$0xff]
        %v2361 = vld [vmem:[%s416 + $0x28] sm:$0xff]
        %v2362 = vld [vmem:[%s416 + $0x30] sm:$0xff]
        %v2363 = vld [vmem:[%s416 + $0x38] sm:$0xff]
        %v2364 = vld [vmem:[%s416 + $0x40] sm:$0xff]
        %v2365 = vld [vmem:[%s416 + $0x48] sm:$0xff]
        %v2366 = vld [vmem:[%s416 + $0x50] sm:$0xff]
        %v2367 = vld [vmem:[%s416 + $0x58] sm:$0xff]
        %v2368 = vld [vmem:[%s416 + $0x60] sm:$0xff]
        %v2369 = vld [vmem:[%s416 + $0x68] sm:$0xff]
        %v2370 = vld [vmem:[%s416 + $0x70] sm:$0xff]
        %v2371 = vld [vmem:[%s416 + $0x78] sm:$0xff]
        %v2372 = vld [vmem:[%s416 + $0x80] sm:$0xff]
        %v2373 = vld [vmem:[%s416 + $0x88] sm:$0xff]
        %v2374 = vld [vmem:[%s416 + $0x90] sm:$0xff]
        %v2375 = vld [vmem:[%s416 + $0x98] sm:$0xff]
        %v2376 = vld [vmem:[%s416 + $0xa0] sm:$0xff]
        %v2377 = vld [vmem:[%s416 + $0xa8] sm:$0xff]
        %v2378 = vld [vmem:[%s416 + $0xb0] sm:$0xff]
        %v2379 = vld [vmem:[%s416 + $0xb8] sm:$0xff]
        %v2380 = vld [vmem:[%s416 + $0xc0] sm:$0xff]
        %v2381 = vld [vmem:[%s416 + $0xc8] sm:$0xff]
        %v2382 = vld [vmem:[%s416 + $0xd0] sm:$0xff]
        %v2383 = vld [vmem:[%s416 + $0xd8] sm:$0xff]
        %v2384 = vld [vmem:[%s416 + $0xe0] sm:$0xff]
        %v2385 = vld [vmem:[%s416 + $0xe8] sm:$0xff]
        %v2386 = vld [vmem:[%s416 + $0xf0] sm:$0xff]
        %v2387 = vld [vmem:[%s416 + $0xf8] sm:$0xff]
        %v2388 = vld [vmem:[%s416 + $0x100] sm:$0xff]
        %v2389 = vld [vmem:[%s416 + $0x108] sm:$0xff]
        %v2390 = vld [vmem:[%s416 + $0x110] sm:$0xff]
        %v2391 = vld [vmem:[%s416 + $0x118] sm:$0xff]
        %v2392 = vld [vmem:[%s416 + $0x120] sm:$0xff]
        %v2393 = vld [vmem:[%s416 + $0x128] sm:$0xff]
        %v2394 = vld [vmem:[%s416 + $0x130] sm:$0xff]
        %v2395 = vld [vmem:[%s416 + $0x138] sm:$0xff]
        %v2396 = vld [vmem:[%s416 + $0x140] sm:$0xff]
        %v2397 = vld [vmem:[%s416 + $0x148] sm:$0xff]
        %v2398 = vld [vmem:[%s416 + $0x150] sm:$0xff]
        %v2399 = vld [vmem:[%s416 + $0x158] sm:$0xff]
        %v2400 = vld [vmem:[%s416 + $0x160] sm:$0xff]
        %v2401 = vld [vmem:[%s416 + $0x168] sm:$0xff]
        %v2402 = vld [vmem:[%s416 + $0x170] sm:$0xff]
        %v2403 = vld [vmem:[%s416 + $0x178] sm:$0xff]
        %v2404 = vld [vmem:[%s416 + $0x180] sm:$0xff]
        %v2405 = vld [vmem:[%s416 + $0x188] sm:$0xff]
        %v2406 = vld [vmem:[%s416 + $0x190] sm:$0xff]
        %v2407 = vld [vmem:[%s416 + $0x198] sm:$0xff]
        %v2408 = vld [vmem:[%s416 + $0x1a0] sm:$0xff]
        %v2409 = vld [vmem:[%s416 + $0x1a8] sm:$0xff]
        %v2410 = vld [vmem:[%s416 + $0x1b0] sm:$0xff]
        %v2411 = vld [vmem:[%s416 + $0x1b8] sm:$0xff]
        %v2412 = vld [vmem:[%s416 + $0x1c0] sm:$0xff]
        %v2413 = vld [vmem:[%s416 + $0x1c8] sm:$0xff]
        %v2414 = vld [vmem:[%s416 + $0x1d0] sm:$0xff]
        %v2415 = vld [vmem:[%s416 + $0x1d8] sm:$0xff]
        %v2416 = vld [vmem:[%s416 + $0x1e0] sm:$0xff]
        %v2417 = vld [vmem:[%s416 + $0x1e8] sm:$0xff]
        %v2418 = vld [vmem:[%s416 + $0x1f0] sm:$0xff]
        %v2419 = vsub.f32 %v2356, %v2043
        %v2420 = vsub.f32 %v2357, %v2048
        %v2421 = vsub.f32 %v2358, %v2053
        %v2422 = vsub.f32 %v2359, %v2058
        %v2423 = vsub.f32 %v2360, %v2063
        %v2424 = vsub.f32 %v2361, %v2068
        %v2425 = vsub.f32 %v2362, %v2073
        %v2426 = vsub.f32 %v2363, %v2078
        %v2427 = vsub.f32 %v2364, %v2083
        %v2428 = vsub.f32 %v2365, %v2088
        %v2429 = vsub.f32 %v2366, %v2093
        %v2430 = vsub.f32 %v2367, %v2098
        %v2431 = vsub.f32 %v2368, %v2103
        %v2432 = vsub.f32 %v2369, %v2108
        %v2433 = vsub.f32 %v2370, %v2113
        %v2434 = vsub.f32 %v2371, %v2118
        %v2435 = vsub.f32 %v2372, %v2123
        %v2436 = vsub.f32 %v2373, %v2128
        %v2437 = vsub.f32 %v2374, %v2133
        %v2438 = vsub.f32 %v2375, %v2138
        %v2439 = vsub.f32 %v2376, %v2143
        %v2440 = vsub.f32 %v2377, %v2148
        %v2441 = vsub.f32 %v2378, %v2153
        %v2442 = vsub.f32 %v2379, %v2158
        %v2443 = vsub.f32 %v2380, %v2163
        %v2444 = vsub.f32 %v2381, %v2168
        %v2445 = vsub.f32 %v2382, %v2173
        %v2446 = vsub.f32 %v2383, %v2178
        %v2447 = vsub.f32 %v2384, %v2183
        %v2448 = vsub.f32 %v2385, %v2188
        %v2449 = vsub.f32 %v2386, %v2193
        %v2450 = vsub.f32 %v2387, %v2198
        %v2451 = vsub.f32 %v2388, %v2203
        %v2452 = vsub.f32 %v2389, %v2208
        %v2453 = vsub.f32 %v2390, %v2213
        %v2454 = vsub.f32 %v2391, %v2218
        %v2455 = vsub.f32 %v2392, %v2223
        %v2456 = vsub.f32 %v2393, %v2228
        %v2457 = vsub.f32 %v2394, %v2233
        %v2458 = vsub.f32 %v2395, %v2238
        %v2459 = vsub.f32 %v2396, %v2243
        %v2460 = vsub.f32 %v2397, %v2248
        %v2461 = vsub.f32 %v2398, %v2253
        %v2462 = vsub.f32 %v2399, %v2258
        %v2463 = vsub.f32 %v2400, %v2263
        %v2464 = vsub.f32 %v2401, %v2268
        %v2465 = vsub.f32 %v2402, %v2273
        %v2466 = vsub.f32 %v2403, %v2278
        %v2467 = vsub.f32 %v2404, %v2283
        %v2468 = vsub.f32 %v2405, %v2288
        %v2469 = vsub.f32 %v2406, %v2293
        %v2470 = vsub.f32 %v2407, %v2298
        %v2471 = vsub.f32 %v2408, %v2303
        %v2472 = vsub.f32 %v2409, %v2308
        %v2473 = vsub.f32 %v2410, %v2313
        %v2474 = vsub.f32 %v2411, %v2318
        %v2475 = vsub.f32 %v2412, %v2323
        %v2476 = vsub.f32 %v2413, %v2328
        %v2477 = vsub.f32 %v2414, %v2333
        %v2478 = vsub.f32 %v2415, %v2338
        %v2479 = vsub.f32 %v2416, %v2343
        %v2480 = vsub.f32 %v2417, %v2348
        %v2481 = vsub.f32 %v2418, %v2353
        %v2482 = vld [vmem:[%s8] sm:$0x1]
        %v2484 = vlaneseq
        %v2485 = vshrl.u32 %v2484, 7
        %v2486 = vsub.s32 0, %v2485
        %v2487 = vrot.slane %v2482, %v2486
        %v2489 = vmul.f32 %v2419, %v2487
        %v2490 = vmul.f32 %v2420, %v2487
        %v2491 = vmul.f32 %v2421, %v2487
        %v2492 = vmul.f32 %v2422, %v2487
        %v2493 = vmul.f32 %v2423, %v2487
        %v2494 = vmul.f32 %v2424, %v2487
        %v2495 = vmul.f32 %v2425, %v2487
        %v2496 = vmul.f32 %v2426, %v2487
        %v2497 = vmul.f32 %v2427, %v2487
        %v2498 = vmul.f32 %v2428, %v2487
        %v2499 = vmul.f32 %v2429, %v2487
        %v2500 = vmul.f32 %v2430, %v2487
        %v2501 = vmul.f32 %v2431, %v2487
        %v2502 = vmul.f32 %v2432, %v2487
        %v2503 = vmul.f32 %v2433, %v2487
        %v2504 = vmul.f32 %v2434, %v2487
        %v2505 = vmul.f32 %v2435, %v2487
        %v2506 = vmul.f32 %v2436, %v2487
        %v2507 = vmul.f32 %v2437, %v2487
        %v2508 = vmul.f32 %v2438, %v2487
        %v2509 = vmul.f32 %v2439, %v2487
        %v2510 = vmul.f32 %v2440, %v2487
        %v2511 = vmul.f32 %v2441, %v2487
        %v2512 = vmul.f32 %v2442, %v2487
        %v2513 = vmul.f32 %v2443, %v2487
        %v2514 = vmul.f32 %v2444, %v2487
        %v2515 = vmul.f32 %v2445, %v2487
        %v2516 = vmul.f32 %v2446, %v2487
        %v2517 = vmul.f32 %v2447, %v2487
        %v2518 = vmul.f32 %v2448, %v2487
        %v2519 = vmul.f32 %v2449, %v2487
        %v2520 = vmul.f32 %v2450, %v2487
        %v2521 = vmul.f32 %v2451, %v2487
        %v2522 = vmul.f32 %v2452, %v2487
        %v2523 = vmul.f32 %v2453, %v2487
        %v2524 = vmul.f32 %v2454, %v2487
        %v2525 = vmul.f32 %v2455, %v2487
        %v2526 = vmul.f32 %v2456, %v2487
        %v2527 = vmul.f32 %v2457, %v2487
        %v2528 = vmul.f32 %v2458, %v2487
        %v2529 = vmul.f32 %v2459, %v2487
        %v2530 = vmul.f32 %v2460, %v2487
        %v2531 = vmul.f32 %v2461, %v2487
        %v2532 = vmul.f32 %v2462, %v2487
        %v2533 = vmul.f32 %v2463, %v2487
        %v2534 = vmul.f32 %v2464, %v2487
        %v2535 = vmul.f32 %v2465, %v2487
        %v2536 = vmul.f32 %v2466, %v2487
        %v2537 = vmul.f32 %v2467, %v2487
        %v2538 = vmul.f32 %v2468, %v2487
        %v2539 = vmul.f32 %v2469, %v2487
        %v2540 = vmul.f32 %v2470, %v2487
        %v2541 = vmul.f32 %v2471, %v2487
        %v2542 = vmul.f32 %v2472, %v2487
        %v2543 = vmul.f32 %v2473, %v2487
        %v2544 = vmul.f32 %v2474, %v2487
        %v2545 = vmul.f32 %v2475, %v2487
        %v2546 = vmul.f32 %v2476, %v2487
        %v2547 = vmul.f32 %v2477, %v2487
        %v2548 = vmul.f32 %v2478, %v2487
        %v2549 = vmul.f32 %v2479, %v2487
        %v2550 = vmul.f32 %v2480, %v2487
        %v2551 = vmul.f32 %v2481, %v2487
        %v2552 = vmul.f32 %v2489, -0.5
        %v2553 = vmul.f32 %v2490, -0.5
        %v2554 = vmul.f32 %v2491, -0.5
        %v2555 = vmul.f32 %v2492, -0.5
        %v2556 = vmul.f32 %v2493, -0.5
        %v2557 = vmul.f32 %v2494, -0.5
        %v2558 = vmul.f32 %v2495, -0.5
        %v2559 = vmul.f32 %v2496, -0.5
        %v2560 = vmul.f32 %v2497, -0.5
        %v2561 = vmul.f32 %v2498, -0.5
        %v2562 = vmul.f32 %v2499, -0.5
        %v2563 = vmul.f32 %v2500, -0.5
        %v2564 = vmul.f32 %v2501, -0.5
        %v2565 = vmul.f32 %v2502, -0.5
        %v2566 = vmul.f32 %v2503, -0.5
        %v2567 = vmul.f32 %v2504, -0.5
        %v2568 = vmul.f32 %v2505, -0.5
        %v2569 = vmul.f32 %v2506, -0.5
        %v2570 = vmul.f32 %v2507, -0.5
        %v2571 = vmul.f32 %v2508, -0.5
        %v2572 = vmul.f32 %v2509, -0.5
        %v2573 = vmul.f32 %v2510, -0.5
        %v2574 = vmul.f32 %v2511, -0.5
        %v2575 = vmul.f32 %v2512, -0.5
        %v2576 = vmul.f32 %v2513, -0.5
        %v2577 = vmul.f32 %v2514, -0.5
        %v2578 = vmul.f32 %v2515, -0.5
        %v2579 = vmul.f32 %v2516, -0.5
        %v2580 = vmul.f32 %v2517, -0.5
        %v2581 = vmul.f32 %v2518, -0.5
        %v2582 = vmul.f32 %v2519, -0.5
        %v2583 = vmul.f32 %v2520, -0.5
        %v2584 = vmul.f32 %v2521, -0.5
        %v2585 = vmul.f32 %v2522, -0.5
        %v2586 = vmul.f32 %v2523, -0.5
        %v2587 = vmul.f32 %v2524, -0.5
        %v2588 = vmul.f32 %v2525, -0.5
        %v2589 = vmul.f32 %v2526, -0.5
        %v2590 = vmul.f32 %v2527, -0.5
        %v2591 = vmul.f32 %v2528, -0.5
        %v2592 = vmul.f32 %v2529, -0.5
        %v2593 = vmul.f32 %v2530, -0.5
        %v2594 = vmul.f32 %v2531, -0.5
        %v2595 = vmul.f32 %v2532, -0.5
        %v2596 = vmul.f32 %v2533, -0.5
        %v2597 = vmul.f32 %v2534, -0.5
        %v2598 = vmul.f32 %v2535, -0.5
        %v2599 = vmul.f32 %v2536, -0.5
        %v2600 = vmul.f32 %v2537, -0.5
        %v2601 = vmul.f32 %v2538, -0.5
        %v2602 = vmul.f32 %v2539, -0.5
        %v2603 = vmul.f32 %v2540, -0.5
        %v2604 = vmul.f32 %v2541, -0.5
        %v2605 = vmul.f32 %v2542, -0.5
        %v2606 = vmul.f32 %v2543, -0.5
        %v2607 = vmul.f32 %v2544, -0.5
        %v2608 = vmul.f32 %v2545, -0.5
        %v2609 = vmul.f32 %v2546, -0.5
        %v2610 = vmul.f32 %v2547, -0.5
        %v2611 = vmul.f32 %v2548, -0.5
        %v2612 = vmul.f32 %v2549, -0.5
        %v2613 = vmul.f32 %v2550, -0.5
        %v2614 = vmul.f32 %v2551, -0.5
        %v2615 = vmul.f32 %v2552, %v2489
        %v2616 = vmul.f32 %v2553, %v2490
        %v2617 = vmul.f32 %v2554, %v2491
        %v2618 = vmul.f32 %v2555, %v2492
        %v2619 = vmul.f32 %v2556, %v2493
        %v2620 = vmul.f32 %v2557, %v2494
        %v2621 = vmul.f32 %v2558, %v2495
        %v2622 = vmul.f32 %v2559, %v2496
        %v2623 = vmul.f32 %v2560, %v2497
        %v2624 = vmul.f32 %v2561, %v2498
        %v2625 = vmul.f32 %v2562, %v2499
        %v2626 = vmul.f32 %v2563, %v2500
        %v2627 = vmul.f32 %v2564, %v2501
        %v2628 = vmul.f32 %v2565, %v2502
        %v2629 = vmul.f32 %v2566, %v2503
        %v2630 = vmul.f32 %v2567, %v2504
        %v2631 = vmul.f32 %v2568, %v2505
        %v2632 = vmul.f32 %v2569, %v2506
        %v2633 = vmul.f32 %v2570, %v2507
        %v2634 = vmul.f32 %v2571, %v2508
        %v2635 = vmul.f32 %v2572, %v2509
        %v2636 = vmul.f32 %v2573, %v2510
        %v2637 = vmul.f32 %v2574, %v2511
        %v2638 = vmul.f32 %v2575, %v2512
        %v2639 = vmul.f32 %v2576, %v2513
        %v2640 = vmul.f32 %v2577, %v2514
        %v2641 = vmul.f32 %v2578, %v2515
        %v2642 = vmul.f32 %v2579, %v2516
        %v2643 = vmul.f32 %v2580, %v2517
        %v2644 = vmul.f32 %v2581, %v2518
        %v2645 = vmul.f32 %v2582, %v2519
        %v2646 = vmul.f32 %v2583, %v2520
        %v2647 = vmul.f32 %v2584, %v2521
        %v2648 = vmul.f32 %v2585, %v2522
        %v2649 = vmul.f32 %v2586, %v2523
        %v2650 = vmul.f32 %v2587, %v2524
        %v2651 = vmul.f32 %v2588, %v2525
        %v2652 = vmul.f32 %v2589, %v2526
        %v2653 = vmul.f32 %v2590, %v2527
        %v2654 = vmul.f32 %v2591, %v2528
        %v2655 = vmul.f32 %v2592, %v2529
        %v2656 = vmul.f32 %v2593, %v2530
        %v2657 = vmul.f32 %v2594, %v2531
        %v2658 = vmul.f32 %v2595, %v2532
        %v2659 = vmul.f32 %v2596, %v2533
        %v2660 = vmul.f32 %v2597, %v2534
        %v2661 = vmul.f32 %v2598, %v2535
        %v2662 = vmul.f32 %v2599, %v2536
        %v2663 = vmul.f32 %v2600, %v2537
        %v2664 = vmul.f32 %v2601, %v2538
        %v2665 = vmul.f32 %v2602, %v2539
        %v2666 = vmul.f32 %v2603, %v2540
        %v2667 = vmul.f32 %v2604, %v2541
        %v2668 = vmul.f32 %v2605, %v2542
        %v2669 = vmul.f32 %v2606, %v2543
        %v2670 = vmul.f32 %v2607, %v2544
        %v2671 = vmul.f32 %v2608, %v2545
        %v2672 = vmul.f32 %v2609, %v2546
        %v2673 = vmul.f32 %v2610, %v2547
        %v2674 = vmul.f32 %v2611, %v2548
        %v2675 = vmul.f32 %v2612, %v2549
        %v2676 = vmul.f32 %v2613, %v2550
        %v2677 = vmul.f32 %v2614, %v2551
        %v2678 = vld [vmem:[%s9] sm:$0x1]
        %v2680 = vlaneseq
        %v2681 = vshrl.u32 %v2680, 7
        %v2682 = vsub.s32 0, %v2681
        %v2683 = vrot.slane %v2678, %v2682
        %v2685 = vadd.f32 %v2615, %v2683
        %v2686 = vadd.f32 %v2616, %v2683
        %v2687 = vadd.f32 %v2617, %v2683
        %v2688 = vadd.f32 %v2618, %v2683
        %v2689 = vadd.f32 %v2619, %v2683
        %v2690 = vadd.f32 %v2620, %v2683
        %v2691 = vadd.f32 %v2621, %v2683
        %v2692 = vadd.f32 %v2622, %v2683
        %v2693 = vadd.f32 %v2623, %v2683
        %v2694 = vadd.f32 %v2624, %v2683
        %v2695 = vadd.f32 %v2625, %v2683
        %v2696 = vadd.f32 %v2626, %v2683
        %v2697 = vadd.f32 %v2627, %v2683
        %v2698 = vadd.f32 %v2628, %v2683
        %v2699 = vadd.f32 %v2629, %v2683
        %v2700 = vadd.f32 %v2630, %v2683
        %v2701 = vadd.f32 %v2631, %v2683
        %v2702 = vadd.f32 %v2632, %v2683
        %v2703 = vadd.f32 %v2633, %v2683
        %v2704 = vadd.f32 %v2634, %v2683
        %v2705 = vadd.f32 %v2635, %v2683
        %v2706 = vadd.f32 %v2636, %v2683
        %v2707 = vadd.f32 %v2637, %v2683
        %v2708 = vadd.f32 %v2638, %v2683
        %v2709 = vadd.f32 %v2639, %v2683
        %v2710 = vadd.f32 %v2640, %v2683
        %v2711 = vadd.f32 %v2641, %v2683
        %v2712 = vadd.f32 %v2642, %v2683
        %v2713 = vadd.f32 %v2643, %v2683
        %v2714 = vadd.f32 %v2644, %v2683
        %v2715 = vadd.f32 %v2645, %v2683
        %v2716 = vadd.f32 %v2646, %v2683
        %v2717 = vadd.f32 %v2647, %v2683
        %v2718 = vadd.f32 %v2648, %v2683
        %v2719 = vadd.f32 %v2649, %v2683
        %v2720 = vadd.f32 %v2650, %v2683
        %v2721 = vadd.f32 %v2651, %v2683
        %v2722 = vadd.f32 %v2652, %v2683
        %v2723 = vadd.f32 %v2653, %v2683
        %v2724 = vadd.f32 %v2654, %v2683
        %v2725 = vadd.f32 %v2655, %v2683
        %v2726 = vadd.f32 %v2656, %v2683
        %v2727 = vadd.f32 %v2657, %v2683
        %v2728 = vadd.f32 %v2658, %v2683
        %v2729 = vadd.f32 %v2659, %v2683
        %v2730 = vadd.f32 %v2660, %v2683
        %v2731 = vadd.f32 %v2661, %v2683
        %v2732 = vadd.f32 %v2662, %v2683
        %v2733 = vadd.f32 %v2663, %v2683
        %v2734 = vadd.f32 %v2664, %v2683
        %v2735 = vadd.f32 %v2665, %v2683
        %v2736 = vadd.f32 %v2666, %v2683
        %v2737 = vadd.f32 %v2667, %v2683
        %v2738 = vadd.f32 %v2668, %v2683
        %v2739 = vadd.f32 %v2669, %v2683
        %v2740 = vadd.f32 %v2670, %v2683
        %v2741 = vadd.f32 %v2671, %v2683
        %v2742 = vadd.f32 %v2672, %v2683
        %v2743 = vadd.f32 %v2673, %v2683
        %v2744 = vadd.f32 %v2674, %v2683
        %v2745 = vadd.f32 %v2675, %v2683
        %v2746 = vadd.f32 %v2676, %v2683
        %v2747 = vadd.f32 %v2677, %v2683
        %vm2748 = vcmask 31744
        %v2749 = vsel %vm2748, %v2685, 0.0
        %2750 = vadd.xlane.f32.xlu0 %v2749
        %v2751 = vpop.xlane.xlu0 %2750
        %v2752 = vsel %vm2748, %v2686, 0.0
        %2753 = vadd.xlane.f32.xlu0 %v2752
        %v2754 = vpop.xlane.xlu0 %2753
        %v2755 = vsel %vm2748, %v2687, 0.0
        %2756 = vadd.xlane.f32.xlu0 %v2755
        %v2757 = vpop.xlane.xlu0 %2756
        %v2758 = vsel %vm2748, %v2688, 0.0
        %2759 = vadd.xlane.f32.xlu0 %v2758
        %v2760 = vpop.xlane.xlu0 %2759
        %v2761 = vsel %vm2748, %v2689, 0.0
        %2762 = vadd.xlane.f32.xlu0 %v2761
        %v2763 = vpop.xlane.xlu0 %2762
        %v2764 = vsel %vm2748, %v2690, 0.0
        %2765 = vadd.xlane.f32.xlu0 %v2764
        %v2766 = vpop.xlane.xlu0 %2765
        %v2767 = vsel %vm2748, %v2691, 0.0
        %2768 = vadd.xlane.f32.xlu0 %v2767
        %v2769 = vpop.xlane.xlu0 %2768
        %v2770 = vsel %vm2748, %v2692, 0.0
        %2771 = vadd.xlane.f32.xlu0 %v2770
        %v2772 = vpop.xlane.xlu0 %2771
        %v2773 = vsel %vm2748, %v2693, 0.0
        %2774 = vadd.xlane.f32.xlu0 %v2773
        %v2775 = vpop.xlane.xlu0 %2774
        %v2776 = vsel %vm2748, %v2694, 0.0
        %2777 = vadd.xlane.f32.xlu0 %v2776
        %v2778 = vpop.xlane.xlu0 %2777
        %v2779 = vsel %vm2748, %v2695, 0.0
        %2780 = vadd.xlane.f32.xlu0 %v2779
        %v2781 = vpop.xlane.xlu0 %2780
        %v2782 = vsel %vm2748, %v2696, 0.0
        %2783 = vadd.xlane.f32.xlu0 %v2782
        %v2784 = vpop.xlane.xlu0 %2783
        %v2785 = vsel %vm2748, %v2697, 0.0
        %2786 = vadd.xlane.f32.xlu0 %v2785
        %v2787 = vpop.xlane.xlu0 %2786
        %v2788 = vsel %vm2748, %v2698, 0.0
        %2789 = vadd.xlane.f32.xlu0 %v2788
        %v2790 = vpop.xlane.xlu0 %2789
        %v2791 = vsel %vm2748, %v2699, 0.0
        %2792 = vadd.xlane.f32.xlu0 %v2791
        %v2793 = vpop.xlane.xlu0 %2792
        %v2794 = vsel %vm2748, %v2700, 0.0
        %2795 = vadd.xlane.f32.xlu0 %v2794
        %v2796 = vpop.xlane.xlu0 %2795
        %v2797 = vsel %vm2748, %v2701, 0.0
        %2798 = vadd.xlane.f32.xlu0 %v2797
        %v2799 = vpop.xlane.xlu0 %2798
        %v2800 = vsel %vm2748, %v2702, 0.0
        %2801 = vadd.xlane.f32.xlu0 %v2800
        %v2802 = vpop.xlane.xlu0 %2801
        %v2803 = vsel %vm2748, %v2703, 0.0
        %2804 = vadd.xlane.f32.xlu0 %v2803
        %v2805 = vpop.xlane.xlu0 %2804
        %v2806 = vsel %vm2748, %v2704, 0.0
        %2807 = vadd.xlane.f32.xlu0 %v2806
        %v2808 = vpop.xlane.xlu0 %2807
        %v2809 = vsel %vm2748, %v2705, 0.0
        %2810 = vadd.xlane.f32.xlu0 %v2809
        %v2811 = vpop.xlane.xlu0 %2810
        %v2812 = vsel %vm2748, %v2706, 0.0
        %2813 = vadd.xlane.f32.xlu0 %v2812
        %v2814 = vpop.xlane.xlu0 %2813
        %v2815 = vsel %vm2748, %v2707, 0.0
        %2816 = vadd.xlane.f32.xlu0 %v2815
        %v2817 = vpop.xlane.xlu0 %2816
        %v2818 = vsel %vm2748, %v2708, 0.0
        %2819 = vadd.xlane.f32.xlu0 %v2818
        %v2820 = vpop.xlane.xlu0 %2819
        %v2821 = vsel %vm2748, %v2709, 0.0
        %2822 = vadd.xlane.f32.xlu0 %v2821
        %v2823 = vpop.xlane.xlu0 %2822
        %v2824 = vsel %vm2748, %v2710, 0.0
        %2825 = vadd.xlane.f32.xlu0 %v2824
        %v2826 = vpop.xlane.xlu0 %2825
        %v2827 = vsel %vm2748, %v2711, 0.0
        %2828 = vadd.xlane.f32.xlu0 %v2827
        %v2829 = vpop.xlane.xlu0 %2828
        %v2830 = vsel %vm2748, %v2712, 0.0
        %2831 = vadd.xlane.f32.xlu0 %v2830
        %v2832 = vpop.xlane.xlu0 %2831
        %v2833 = vsel %vm2748, %v2713, 0.0
        %2834 = vadd.xlane.f32.xlu0 %v2833
        %v2835 = vpop.xlane.xlu0 %2834
        %v2836 = vsel %vm2748, %v2714, 0.0
        %2837 = vadd.xlane.f32.xlu0 %v2836
        %v2838 = vpop.xlane.xlu0 %2837
        %v2839 = vsel %vm2748, %v2715, 0.0
        %2840 = vadd.xlane.f32.xlu0 %v2839
        %v2841 = vpop.xlane.xlu0 %2840
        %v2842 = vsel %vm2748, %v2716, 0.0
        %2843 = vadd.xlane.f32.xlu0 %v2842
        %v2844 = vpop.xlane.xlu0 %2843
        %v2845 = vsel %vm2748, %v2717, 0.0
        %2846 = vadd.xlane.f32.xlu0 %v2845
        %v2847 = vpop.xlane.xlu0 %2846
        %v2848 = vsel %vm2748, %v2718, 0.0
        %2849 = vadd.xlane.f32.xlu0 %v2848
        %v2850 = vpop.xlane.xlu0 %2849
        %v2851 = vsel %vm2748, %v2719, 0.0
        %2852 = vadd.xlane.f32.xlu0 %v2851
        %v2853 = vpop.xlane.xlu0 %2852
        %v2854 = vsel %vm2748, %v2720, 0.0
        %2855 = vadd.xlane.f32.xlu0 %v2854
        %v2856 = vpop.xlane.xlu0 %2855
        %v2857 = vsel %vm2748, %v2721, 0.0
        %2858 = vadd.xlane.f32.xlu0 %v2857
        %v2859 = vpop.xlane.xlu0 %2858
        %v2860 = vsel %vm2748, %v2722, 0.0
        %2861 = vadd.xlane.f32.xlu0 %v2860
        %v2862 = vpop.xlane.xlu0 %2861
        %v2863 = vsel %vm2748, %v2723, 0.0
        %2864 = vadd.xlane.f32.xlu0 %v2863
        %v2865 = vpop.xlane.xlu0 %2864
        %v2866 = vsel %vm2748, %v2724, 0.0
        %2867 = vadd.xlane.f32.xlu0 %v2866
        %v2868 = vpop.xlane.xlu0 %2867
        %v2869 = vsel %vm2748, %v2725, 0.0
        %2870 = vadd.xlane.f32.xlu0 %v2869
        %v2871 = vpop.xlane.xlu0 %2870
        %v2872 = vsel %vm2748, %v2726, 0.0
        %2873 = vadd.xlane.f32.xlu0 %v2872
        %v2874 = vpop.xlane.xlu0 %2873
        %v2875 = vsel %vm2748, %v2727, 0.0
        %2876 = vadd.xlane.f32.xlu0 %v2875
        %v2877 = vpop.xlane.xlu0 %2876
        %v2878 = vsel %vm2748, %v2728, 0.0
        %2879 = vadd.xlane.f32.xlu0 %v2878
        %v2880 = vpop.xlane.xlu0 %2879
        %v2881 = vsel %vm2748, %v2729, 0.0
        %2882 = vadd.xlane.f32.xlu0 %v2881
        %v2883 = vpop.xlane.xlu0 %2882
        %v2884 = vsel %vm2748, %v2730, 0.0
        %2885 = vadd.xlane.f32.xlu0 %v2884
        %v2886 = vpop.xlane.xlu0 %2885
        %v2887 = vsel %vm2748, %v2731, 0.0
        %2888 = vadd.xlane.f32.xlu0 %v2887
        %v2889 = vpop.xlane.xlu0 %2888
        %v2890 = vsel %vm2748, %v2732, 0.0
        %2891 = vadd.xlane.f32.xlu0 %v2890
        %v2892 = vpop.xlane.xlu0 %2891
        %v2893 = vsel %vm2748, %v2733, 0.0
        %2894 = vadd.xlane.f32.xlu0 %v2893
        %v2895 = vpop.xlane.xlu0 %2894
        %v2896 = vsel %vm2748, %v2734, 0.0
        %2897 = vadd.xlane.f32.xlu0 %v2896
        %v2898 = vpop.xlane.xlu0 %2897
        %v2899 = vsel %vm2748, %v2735, 0.0
        %2900 = vadd.xlane.f32.xlu0 %v2899
        %v2901 = vpop.xlane.xlu0 %2900
        %v2902 = vsel %vm2748, %v2736, 0.0
        %2903 = vadd.xlane.f32.xlu0 %v2902
        %v2904 = vpop.xlane.xlu0 %2903
        %v2905 = vsel %vm2748, %v2737, 0.0
        %2906 = vadd.xlane.f32.xlu0 %v2905
        %v2907 = vpop.xlane.xlu0 %2906
        %v2908 = vsel %vm2748, %v2738, 0.0
        %2909 = vadd.xlane.f32.xlu0 %v2908
        %v2910 = vpop.xlane.xlu0 %2909
        %v2911 = vsel %vm2748, %v2739, 0.0
        %2912 = vadd.xlane.f32.xlu0 %v2911
        %v2913 = vpop.xlane.xlu0 %2912
        %v2914 = vsel %vm2748, %v2740, 0.0
        %2915 = vadd.xlane.f32.xlu0 %v2914
        %v2916 = vpop.xlane.xlu0 %2915
        %v2917 = vsel %vm2748, %v2741, 0.0
        %2918 = vadd.xlane.f32.xlu0 %v2917
        %v2919 = vpop.xlane.xlu0 %2918
        %v2920 = vsel %vm2748, %v2742, 0.0
        %2921 = vadd.xlane.f32.xlu0 %v2920
        %v2922 = vpop.xlane.xlu0 %2921
        %v2923 = vsel %vm2748, %v2743, 0.0
        %2924 = vadd.xlane.f32.xlu0 %v2923
        %v2925 = vpop.xlane.xlu0 %2924
        %v2926 = vsel %vm2748, %v2744, 0.0
        %2927 = vadd.xlane.f32.xlu0 %v2926
        %v2928 = vpop.xlane.xlu0 %2927
        %v2929 = vsel %vm2748, %v2745, 0.0
        %2930 = vadd.xlane.f32.xlu0 %v2929
        %v2931 = vpop.xlane.xlu0 %2930
        %v2932 = vsel %vm2748, %v2746, 0.0
        %2933 = vadd.xlane.f32.xlu0 %v2932
        %v2934 = vpop.xlane.xlu0 %2933
        %v2935 = vsel %vm2748, %v2747, 0.0
        %2936 = vadd.xlane.f32.xlu0 %v2935
        %v2937 = vpop.xlane.xlu0 %2936
        %v2938 = vlaneseq
        %v2939 = vand.u32 %v2938, 127
        %vm2940 = vcmp.eq.s32.totalorder %v2939, 4
        %v2941 = vsel %vm2940, %v2751, %v2043
        %v2942 = vsel %vm2940, %v2754, %v2048
        %v2943 = vsel %vm2940, %v2757, %v2053
        %v2944 = vsel %vm2940, %v2760, %v2058
        %v2945 = vsel %vm2940, %v2763, %v2063
        %v2946 = vsel %vm2940, %v2766, %v2068
        %v2947 = vsel %vm2940, %v2769, %v2073
        %v2948 = vsel %vm2940, %v2772, %v2078
        %v2949 = vsel %vm2940, %v2775, %v2083
        %v2950 = vsel %vm2940, %v2778, %v2088
        %v2951 = vsel %vm2940, %v2781, %v2093
        %v2952 = vsel %vm2940, %v2784, %v2098
        %v2953 = vsel %vm2940, %v2787, %v2103
        %v2954 = vsel %vm2940, %v2790, %v2108
        %v2955 = vsel %vm2940, %v2793, %v2113
        %v2956 = vsel %vm2940, %v2796, %v2118
        %v2957 = vsel %vm2940, %v2799, %v2123
        %v2958 = vsel %vm2940, %v2802, %v2128
        %v2959 = vsel %vm2940, %v2805, %v2133
        %v2960 = vsel %vm2940, %v2808, %v2138
        %v2961 = vsel %vm2940, %v2811, %v2143
        %v2962 = vsel %vm2940, %v2814, %v2148
        %v2963 = vsel %vm2940, %v2817, %v2153
        %v2964 = vsel %vm2940, %v2820, %v2158
        %v2965 = vsel %vm2940, %v2823, %v2163
        %v2966 = vsel %vm2940, %v2826, %v2168
        %v2967 = vsel %vm2940, %v2829, %v2173
        %v2968 = vsel %vm2940, %v2832, %v2178
        %v2969 = vsel %vm2940, %v2835, %v2183
        %v2970 = vsel %vm2940, %v2838, %v2188
        %v2971 = vsel %vm2940, %v2841, %v2193
        %v2972 = vsel %vm2940, %v2844, %v2198
        %v2973 = vsel %vm2940, %v2847, %v2203
        %v2974 = vsel %vm2940, %v2850, %v2208
        %v2975 = vsel %vm2940, %v2853, %v2213
        %v2976 = vsel %vm2940, %v2856, %v2218
        %v2977 = vsel %vm2940, %v2859, %v2223
        %v2978 = vsel %vm2940, %v2862, %v2228
        %v2979 = vsel %vm2940, %v2865, %v2233
        %v2980 = vsel %vm2940, %v2868, %v2238
        %v2981 = vsel %vm2940, %v2871, %v2243
        %v2982 = vsel %vm2940, %v2874, %v2248
        %v2983 = vsel %vm2940, %v2877, %v2253
        %v2984 = vsel %vm2940, %v2880, %v2258
        %v2985 = vsel %vm2940, %v2883, %v2263
        %v2986 = vsel %vm2940, %v2886, %v2268
        %v2987 = vsel %vm2940, %v2889, %v2273
        %v2988 = vsel %vm2940, %v2892, %v2278
        %v2989 = vsel %vm2940, %v2895, %v2283
        %v2990 = vsel %vm2940, %v2898, %v2288
        %v2991 = vsel %vm2940, %v2901, %v2293
        %v2992 = vsel %vm2940, %v2904, %v2298
        %v2993 = vsel %vm2940, %v2907, %v2303
        %v2994 = vsel %vm2940, %v2910, %v2308
        %v2995 = vsel %vm2940, %v2913, %v2313
        %v2996 = vsel %vm2940, %v2916, %v2318
        %v2997 = vsel %vm2940, %v2919, %v2323
        %v2998 = vsel %vm2940, %v2922, %v2328
        %v2999 = vsel %vm2940, %v2925, %v2333
        %v3000 = vsel %vm2940, %v2928, %v2338
        %v3001 = vsel %vm2940, %v2931, %v2343
        %v3002 = vsel %vm2940, %v2934, %v2348
        %v3003 = vsel %vm2940, %v2937, %v2353
        %3004 = vst [vmem:[%s393] sm:$0xff] %v2941
        %3005 = vst [vmem:[%s393 + $0x8] sm:$0xff] %v2942
        %3006 = vst [vmem:[%s393 + $0x10] sm:$0xff] %v2943
        %3007 = vst [vmem:[%s393 + $0x18] sm:$0xff] %v2944
        %3008 = vst [vmem:[%s393 + $0x20] sm:$0xff] %v2945
        %3009 = vst [vmem:[%s393 + $0x28] sm:$0xff] %v2946
        %3010 = vst [vmem:[%s393 + $0x30] sm:$0xff] %v2947
        %3011 = vst [vmem:[%s393 + $0x38] sm:$0xff] %v2948
        %3012 = vst [vmem:[%s393 + $0x40] sm:$0xff] %v2949
        %3013 = vst [vmem:[%s393 + $0x48] sm:$0xff] %v2950
        %3014 = vst [vmem:[%s393 + $0x50] sm:$0xff] %v2951
        %3015 = vst [vmem:[%s393 + $0x58] sm:$0xff] %v2952
        %3016 = vst [vmem:[%s393 + $0x60] sm:$0xff] %v2953
        %3017 = vst [vmem:[%s393 + $0x68] sm:$0xff] %v2954
        %3018 = vst [vmem:[%s393 + $0x70] sm:$0xff] %v2955
        %3019 = vst [vmem:[%s393 + $0x78] sm:$0xff] %v2956
        %3020 = vst [vmem:[%s393 + $0x80] sm:$0xff] %v2957
        %3021 = vst [vmem:[%s393 + $0x88] sm:$0xff] %v2958
        %3022 = vst [vmem:[%s393 + $0x90] sm:$0xff] %v2959
        %3023 = vst [vmem:[%s393 + $0x98] sm:$0xff] %v2960
        %3024 = vst [vmem:[%s393 + $0xa0] sm:$0xff] %v2961
        %3025 = vst [vmem:[%s393 + $0xa8] sm:$0xff] %v2962
        %3026 = vst [vmem:[%s393 + $0xb0] sm:$0xff] %v2963
        %3027 = vst [vmem:[%s393 + $0xb8] sm:$0xff] %v2964
        %3028 = vst [vmem:[%s393 + $0xc0] sm:$0xff] %v2965
        %3029 = vst [vmem:[%s393 + $0xc8] sm:$0xff] %v2966
        %3030 = vst [vmem:[%s393 + $0xd0] sm:$0xff] %v2967
        %3031 = vst [vmem:[%s393 + $0xd8] sm:$0xff] %v2968
        %3032 = vst [vmem:[%s393 + $0xe0] sm:$0xff] %v2969
        %3033 = vst [vmem:[%s393 + $0xe8] sm:$0xff] %v2970
        %3034 = vst [vmem:[%s393 + $0xf0] sm:$0xff] %v2971
        %3035 = vst [vmem:[%s393 + $0xf8] sm:$0xff] %v2972
        %3036 = vst [vmem:[%s393 + $0x100] sm:$0xff] %v2973
        %3037 = vst [vmem:[%s393 + $0x108] sm:$0xff] %v2974
        %3038 = vst [vmem:[%s393 + $0x110] sm:$0xff] %v2975
        %3039 = vst [vmem:[%s393 + $0x118] sm:$0xff] %v2976
        %3040 = vst [vmem:[%s393 + $0x120] sm:$0xff] %v2977
        %3041 = vst [vmem:[%s393 + $0x128] sm:$0xff] %v2978
        %3042 = vst [vmem:[%s393 + $0x130] sm:$0xff] %v2979
        %3043 = vst [vmem:[%s393 + $0x138] sm:$0xff] %v2980
        %3044 = vst [vmem:[%s393 + $0x140] sm:$0xff] %v2981
        %3045 = vst [vmem:[%s393 + $0x148] sm:$0xff] %v2982
        %3046 = vst [vmem:[%s393 + $0x150] sm:$0xff] %v2983
        %3047 = vst [vmem:[%s393 + $0x158] sm:$0xff] %v2984
        %3048 = vst [vmem:[%s393 + $0x160] sm:$0xff] %v2985
        %3049 = vst [vmem:[%s393 + $0x168] sm:$0xff] %v2986
        %3050 = vst [vmem:[%s393 + $0x170] sm:$0xff] %v2987
        %3051 = vst [vmem:[%s393 + $0x178] sm:$0xff] %v2988
        %3052 = vst [vmem:[%s393 + $0x180] sm:$0xff] %v2989
        %3053 = vst [vmem:[%s393 + $0x188] sm:$0xff] %v2990
        %3054 = vst [vmem:[%s393 + $0x190] sm:$0xff] %v2991
        %3055 = vst [vmem:[%s393 + $0x198] sm:$0xff] %v2992
        %3056 = vst [vmem:[%s393 + $0x1a0] sm:$0xff] %v2993
        %3057 = vst [vmem:[%s393 + $0x1a8] sm:$0xff] %v2994
        %3058 = vst [vmem:[%s393 + $0x1b0] sm:$0xff] %v2995
        %3059 = vst [vmem:[%s393 + $0x1b8] sm:$0xff] %v2996
        %3060 = vst [vmem:[%s393 + $0x1c0] sm:$0xff] %v2997
        %3061 = vst [vmem:[%s393 + $0x1c8] sm:$0xff] %v2998
        %3062 = vst [vmem:[%s393 + $0x1d0] sm:$0xff] %v2999
        %3063 = vst [vmem:[%s393 + $0x1d8] sm:$0xff] %v3000
        %3064 = vst [vmem:[%s393 + $0x1e0] sm:$0xff] %v3001
        %3065 = vst [vmem:[%s393 + $0x1e8] sm:$0xff] %v3002
        %3066 = vst [vmem:[%s393 + $0x1f0] sm:$0xff] %v3003
        %s3067 = sand.u32 %s252, 1
        %s3068 = scalar_lea.sflag [#allocation3], %s3067
        %s3069 = sand.u32 %s252, 1
        %s3070 = smul.addr %s3069, 504
        %s3071 = scalar_lea.vmem [#allocation2], %s3070
        // Predicated region
        $region61: #{tpu_custom_call.1} parent=59 // pred_check
          %p3072 = pneg %p262
        $region62: #{tpu_custom_call.1} parent=59 // pred_check_branch
          %3074 = sbr.rel (%p3072) target = $region64
        $region63: #{tpu_custom_call.1} parent=59 // pred_region
          %s3075 = smul.u32 63, %s24
          %s3076 = ssub.s32 125, %s3075
          %p3077 = scmp.lt.s32.totalorder %s3076, 63
          %s3078 = scalar_select %p3077, %s3076, 63
          %s3079 = smul.u32 128, %s3078
          %s3081 = ssub.s32 8064, %s3079
          %3082 = vsyncadd %s3068, %s3081
          %p3083 = scmp.ne.s32.totalorder 0, %s3079
          %s3084 = smul.addr %s3075, 128
          %s3085 = scalar_lea.hbm %s10, %s3084
          %s3086 = smul.u32 8, %s3078
          %s3087 = sshll.u32 %s3071, 4
          %s3088 = int_to_ptr.vmem [resolvable:$true] %s3087
          %s3089 = sshll.u32 %s3086, 4
          %3093 = dma.vmem_to_hbm [thread:$0]  (%p3083), %s3088, %s3089, %s3085, %s3068, 128, 128, 8
        $region64: #{tpu_custom_call.1} parent=59 // pred_fallthru
          _
      $region60: #{tpu_custom_call.1} parent=5 // pred_fallthru
        _
      %p3094 = scmp.le.s32.totalorder 2, %s19
      // Predicated region
      $region65: #{tpu_custom_call.1} parent=5 // pred_check
        %p3095 = pneg %p3094
      $region66: #{tpu_custom_call.1} parent=5 // pred_check_branch
        %3097 = sbr.rel (%p3095) target = $region68
      $region67: #{tpu_custom_call.1} parent=5 // pred_region
        %s3098 = ssub.s32 %s19, 2
        // Predicated region
        $region69: #{tpu_custom_call.1} parent=67 // pred_check
          %p3099 = pneg %p268
        $region70: #{tpu_custom_call.1} parent=67 // pred_check_branch
          %3101 = sbr.rel (%p3099) target = $region72
        $region71: #{tpu_custom_call.1} parent=67 // pred_region
          %s3102 = sand.u32 %s253, 1
          %s3103 = scalar_lea.sflag [#allocation3], %s3102
          %s3104 = sand.u32 %s253, 1
          %s3105 = smul.addr %s3104, 504
          %s3106 = scalar_lea.vmem [#allocation2], %s3105
          %3107 = dma.done %s3103, 8064
        $region72: #{tpu_custom_call.1} parent=67 // pred_fallthru
          _
      $region68: #{tpu_custom_call.1} parent=5 // pred_fallthru
        _
    $region6: #{tpu_custom_call.1} parent=1 // loop_footer
      %s23 = sadd.s32 1, %s19
    $region7: #{tpu_custom_call.1} parent=1 // loop_footer_branch
      %18 = sbr.rel target = $region3
    $region8: #{tpu_custom_call.1} parent=1 // loop_exit
      _
    %3108 = vsyncpa [#allocation3], 1
    %s3109 = scalar_lea.sflag [#allocation3], 1
    %3110 = vsyncpa %s3109, 1

</llo_original>
